<compile_context>
chip_gen: v6e
topology: v6e:2x2x1
jax: 0.10.0
libtpu: 0.0.40
codegen_flags: <defaults>
</compile_context>

<pallas_src>
import jax
import jax.numpy as jnp
from jax import lax
from jax.experimental import pallas as pl
from jax.experimental.pallas import tpu as pltpu


def _round_up(x, m):
    return ((x + m - 1) // m) * m


def _vmem_capacity_bytes():
    """Per-generation VMEM capacity; conservative fallback = v7x per-TC 64 MiB."""
    try:
        return int(pltpu.get_tpu_info().vmem_capacity_bytes)
    except Exception:
        return 64 << 20


def embedding_kernel(idx_ref, wtab_ref, htab_ref, ttab_ref, out_ref):
    """Three narrow one-hot gathers fused into one already-concatenated tile.

    idx_ref : (N_pad, 3) int32   whole-array VMEM resident (sliced in-kernel)
    wtab_ref: (Vp, Dw)  float32  whole-array VMEM resident word table
    htab_ref: (Pp, Dp)  float32  whole-array VMEM resident head-pos table
    ttab_ref: (Pp, Dp)  float32  whole-array VMEM resident tail-pos table
    out_ref : (T, Dw + 2*Dp) float32 output tile for this grid step
    """
    T = out_ref.shape[0]
    Vp, Dw = wtab_ref.shape
    Pp, Dp = htab_ref.shape

    start = pl.multiple_of(pl.program_id(0) * T, T)
    ids = idx_ref[pl.ds(start, T), :]                       # (T, 3)

    # One-hot values are exactly 0/1; HIGHEST precision keeps f32 table rows
    # bit-faithful through the MXU bf16 decomposition -> exact gather.
    prec = lax.Precision.HIGHEST

    # Word embedding -> output columns [0, Dw)
    lane_v = lax.broadcasted_iota(jnp.int32, (T, Vp), 1)
    onehot_w = (ids[:, 0:1] == lane_v).astype(jnp.float32)  # (T, Vp)
    out_ref[:, :Dw] = jnp.dot(onehot_w, wtab_ref[...],
                              precision=prec,
                              preferred_element_type=jnp.float32)

    # Head-position embedding -> output columns [Dw, Dw+Dp)
    lane_p = lax.broadcasted_iota(jnp.int32, (T, Pp), 1)
    onehot_h = (ids[:, 1:2] == lane_p).astype(jnp.float32)  # (T, Pp)
    out_ref[:, Dw:Dw + Dp] = jnp.dot(onehot_h, htab_ref[...],
                                     precision=prec,
                                     preferred_element_type=jnp.float32)

    # Tail-position embedding -> output columns [Dw+Dp, Dw+2*Dp)
    onehot_t = (ids[:, 2:3] == lane_p).astype(jnp.float32)  # (T, Pp)
    out_ref[:, Dw + Dp:] = jnp.dot(onehot_t, ttab_ref[...],
                                   precision=prec,
                                   preferred_element_type=jnp.float32)


def _pad_rows(table, rows_to):
    """Zero-pad a table's row (contraction) dim; padded rows are never selected."""
    rows, d = table.shape
    out = jnp.zeros((rows_to, d), jnp.float32)
    return out.at[:rows, :].set(table.astype(jnp.float32))


def embedding_forward(words, head_pos, tail_pos,
                      word_table, head_table, tail_table,
                      *, token_tile=512):
    B, S = words.shape
    N = B * S
    V, Dw = word_table.shape
    P, Dp = head_table.shape
    Pt, Dpt = tail_table.shape
    assert (P, Dp) == (Pt, Dpt), "head/tail position tables must match"
    D_total = Dw + 2 * Dp

    # MXU contraction dims padded to 128 (unmasked compares, clean K passes).
    Vp = _round_up(V, 128)
    Pp = _round_up(P, 128)

    # Token tile: multiple of 8 (sublane), clamped so a tiny batch is not
    # padded out to a huge tile.  Default 512 (sweep 512-1024).
    token_tile = max(8, min(_round_up(token_tile, 8), _round_up(N, 8)))
    N_pad = _round_up(N, token_tile)
    grid = (N_pad // token_tile,)

    wtab = _pad_rows(word_table, Vp)
    htab = _pad_rows(head_table, Pp)
    ttab = _pad_rows(tail_table, Pp)

    # Pack the three index streams into one (N_pad, 3) int32 array.  Indices
    # are assumed in-range (like nn.Embedding); padded rows hit id 0, whose
    # table row is zero (padding_idx) and are sliced off afterwards.
    idx = jnp.stack(
        [words.reshape(-1).astype(jnp.int32),
         head_pos.reshape(-1).astype(jnp.int32),
         tail_pos.reshape(-1).astype(jnp.int32)],
        axis=-1)
    idx = jnp.pad(idx, ((0, N_pad - N), (0, 0)))

    flops = 2 * N_pad * (Vp * Dw + 2 * Pp * Dp)
    bytes_accessed = ((Vp * Dw + 2 * Pp * Dp) * 4     # tables
                      + idx.size * 4                  # indices
                      + N_pad * D_total * 4)          # output
    cost = pl.CostEstimate(flops=flops, transcendentals=0,
                           bytes_accessed=bytes_accessed)

    # VMEM plan: resident tables + resident (lane-padded) idx
    #            + double-buffered output tiles + one-hot temporaries.
    table_bytes = (Vp * Dw + 2 * Pp * Dp) * 4
    idx_bytes = N_pad * 128 * 4                        # (N_pad, 3) lane-pads to 128
    out_bytes = 2 * token_tile * _round_up(D_total, 128) * 4
    onehot_bytes = 2 * token_tile * (Vp + 2 * Pp) * 4
    needed = table_bytes + idx_bytes + out_bytes + onehot_bytes
    cap = _vmem_capacity_bytes()
    vmem_limit = int(max(min(needed + (8 << 20), cap - (16 << 20)), 32 << 20))

    out = pl.pallas_call(
        embedding_kernel,
        out_shape=jax.ShapeDtypeStruct((N_pad, D_total), jnp.float32),
        grid_spec=pltpu.PrefetchScalarGridSpec(
            num_scalar_prefetch=0,
            grid=grid,
            in_specs=[
                # packed indices: whole-array VMEM resident, sliced in-kernel
                pl.BlockSpec(memory_space=pltpu.MemorySpace.VMEM),
                # three separate constant tables: whole-array VMEM resident,
                # not run through the per-step double-buffered pipeline
                pl.BlockSpec(memory_space=pltpu.MemorySpace.VMEM),
                pl.BlockSpec(memory_space=pltpu.MemorySpace.VMEM),
                pl.BlockSpec(memory_space=pltpu.MemorySpace.VMEM),
            ],
            out_specs=pl.BlockSpec((token_tile, D_total), lambda i: (i, 0)),
        ),
        compiler_params=pltpu.CompilerParams(
            dimension_semantics=("parallel",),   # shards token tiles across TCs
            vmem_limit_bytes=vmem_limit),
        cost_estimate=cost,
    )(idx, wtab, htab, ttab)

    return out[:N].reshape(B, S, D_total)


def make_table(key, vocab, dim):
    # deterministic init, mimic nn.Embedding default N(0,1) then zero padding_idx=0
    t = jax.random.normal(key, (vocab, dim), dtype=jnp.float32)
    return t.at[0, :].set(0.0)


if __name__ == "__main__":
    # small, shape-consistent config
    vocab_size, word_dim = 128, 64
    pos_size, pos_dim = 64, 32
    B, S = 2, 8

    key = jax.random.PRNGKey(0)
    k_wt, k_ht, k_tt, k_w, k_h, k_t = jax.random.split(key, 6)

    word_table = make_table(k_wt, vocab_size, word_dim)
    head_table = make_table(k_ht, pos_size, pos_dim)
    tail_table = make_table(k_tt, pos_size, pos_dim)

    words = jax.random.randint(k_w, (B, S), 0, vocab_size, dtype=jnp.int32)
    head_pos = jax.random.randint(k_h, (B, S), 0, pos_size, dtype=jnp.int32)
    tail_pos = jax.random.randint(k_t, (B, S), 0, pos_size, dtype=jnp.int32)

    out = embedding_forward(words, head_pos, tail_pos,
                            word_table, head_table, tail_table)
    out = jax.block_until_ready(out)

    # reference check (plain JAX gather + concat)
    ref = jnp.concatenate(
        [jnp.take(word_table, words, axis=0),
         jnp.take(head_table, head_pos, axis=0),
         jnp.take(tail_table, tail_pos, axis=0)], axis=-1)
    assert out.shape == (B, S, word_dim + 2 * pos_dim)
    assert jnp.allclose(out, ref, rtol=1e-6, atol=1e-6)

    print("KERNEL_OK")
</pallas_src>

<mosaic_0001>
module attributes {stable_mosaic.version = 11 : i64} {
  func.func @embedding_kernel(%arg0: i32, %arg1: memref<16x3xi32, #tpu.memory_space<vmem>>, %arg2: memref<128x64xf32, #tpu.memory_space<vmem>>, %arg3: memref<128x32xf32, #tpu.memory_space<vmem>>, %arg4: memref<128x32xf32, #tpu.memory_space<vmem>>, %arg5: memref<16x128xf32, #tpu.memory_space<vmem>>) attributes {dimension_semantics = [#tpu.dimension_semantics<parallel>], iteration_bounds = array<i64: 1>, scalar_prefetch = 0 : i64, scratch_operands = 0 : i64, tpu.core_type = #tpu.core_type<tc>, window_params = [{pipeline_mode = #tpu.pipeline_mode<synchronous>, transform_indices = @transform_0, window_bounds = array<i64: 16, 3>}, {pipeline_mode = #tpu.pipeline_mode<synchronous>, transform_indices = @transform_1, window_bounds = array<i64: 128, 64>}, {pipeline_mode = #tpu.pipeline_mode<synchronous>, transform_indices = @transform_2, window_bounds = array<i64: 128, 32>}, {pipeline_mode = #tpu.pipeline_mode<synchronous>, transform_indices = @transform_3, window_bounds = array<i64: 128, 32>}, {transform_indices = @transform_4, window_bounds = array<i64: 16, 128>}]} {
    %c16_i32 = arith.constant 16 : i32
    %0 = arith.muli %arg0, %c16_i32 : i32
    %1 = tpu.assume_multiple %0, 16 : i32
    %2 = arith.index_cast %1 : i32 to index
    %c0 = arith.constant 0 : index
    %3 = vector.load %arg1[%2, %c0] : memref<16x3xi32, #tpu.memory_space<vmem>>, vector<16x3xi32>
    %4 = tpu.iota {dimensions = array<i32: 1>} : vector<16x128xi32>
    %5 = vector.extract_strided_slice %3 {offsets = [0, 0], sizes = [16, 1], strides = [1, 1]} : vector<16x3xi32> to vector<16x1xi32>
    %6 = vector.broadcast %5 : vector<16x1xi32> to vector<16x128xi32>
    %7 = arith.cmpi eq, %6, %4 : vector<16x128xi32>
    %8 = arith.extui %7 : vector<16x128xi1> to vector<16x128xi32>
    %9 = arith.sitofp %8 : vector<16x128xi32> to vector<16x128xf32>
    %c0_0 = arith.constant 0 : index
    %c0_1 = arith.constant 0 : index
    %10 = vector.load %arg2[%c0_0, %c0_1] : memref<128x64xf32, #tpu.memory_space<vmem>>, vector<128x64xf32>
    %cst = arith.constant dense<0.000000e+00> : vector<16x64xf32>
    %11 = tpu.matmul %9, %10, %cst {dimension_numbers = #tpu.dot_dimension_numbers<[1], [0], [0], [1], [0, 0, 1, 1], [], []>, precision = #tpu.contract_precision<fp32>} : vector<16x128xf32>, vector<128x64xf32>, vector<16x64xf32> -> vector<16x64xf32>
    %c0_2 = arith.constant 0 : index
    %c0_3 = arith.constant 0 : index
    %12 = vector.load %arg5[%c0_2, %c0_3] : memref<16x128xf32, #tpu.memory_space<vmem>>, vector<16x64xf32>
    tpu.vector_store %arg5[%c0_2, %c0_3], %11 {strides = array<i32>} : memref<16x128xf32, #tpu.memory_space<vmem>>, vector<16x64xf32>,
    %13 = tpu.iota {dimensions = array<i32: 1>} : vector<16x128xi32>
    %14 = vector.extract_strided_slice %3 {offsets = [0, 1], sizes = [16, 1], strides = [1, 1]} : vector<16x3xi32> to vector<16x1xi32>
    %15 = vector.broadcast %14 : vector<16x1xi32> to vector<16x128xi32>
    %16 = arith.cmpi eq, %15, %13 : vector<16x128xi32>
    %17 = arith.extui %16 : vector<16x128xi1> to vector<16x128xi32>
    %18 = arith.sitofp %17 : vector<16x128xi32> to vector<16x128xf32>
    %c0_4 = arith.constant 0 : index
    %c0_5 = arith.constant 0 : index
    %19 = vector.load %arg3[%c0_4, %c0_5] : memref<128x32xf32, #tpu.memory_space<vmem>>, vector<128x32xf32>
    %cst_6 = arith.constant dense<0.000000e+00> : vector<16x32xf32>
    %20 = tpu.matmul %18, %19, %cst_6 {dimension_numbers = #tpu.dot_dimension_numbers<[1], [0], [0], [1], [0, 0, 1, 1], [], []>, precision = #tpu.contract_precision<fp32>} : vector<16x128xf32>, vector<128x32xf32>, vector<16x32xf32> -> vector<16x32xf32>
    %c0_7 = arith.constant 0 : index
    %c64 = arith.constant 64 : index
    %21 = vector.load %arg5[%c0_7, %c64] : memref<16x128xf32, #tpu.memory_space<vmem>>, vector<16x32xf32>
    tpu.vector_store %arg5[%c0_7, %c64], %20 {strides = array<i32>} : memref<16x128xf32, #tpu.memory_space<vmem>>, vector<16x32xf32>,
    %22 = vector.extract_strided_slice %3 {offsets = [0, 2], sizes = [16, 1], strides = [1, 1]} : vector<16x3xi32> to vector<16x1xi32>
    %23 = vector.broadcast %22 : vector<16x1xi32> to vector<16x128xi32>
    %24 = arith.cmpi eq, %23, %13 : vector<16x128xi32>
    %25 = arith.extui %24 : vector<16x128xi1> to vector<16x128xi32>
    %26 = arith.sitofp %25 : vector<16x128xi32> to vector<16x128xf32>
    %c0_8 = arith.constant 0 : index
    %c0_9 = arith.constant 0 : index
    %27 = vector.load %arg4[%c0_8, %c0_9] : memref<128x32xf32, #tpu.memory_space<vmem>>, vector<128x32xf32>
    %cst_10 = arith.constant dense<0.000000e+00> : vector<16x32xf32>
    %28 = tpu.matmul %26, %27, %cst_10 {dimension_numbers = #tpu.dot_dimension_numbers<[1], [0], [0], [1], [0, 0, 1, 1], [], []>, precision = #tpu.contract_precision<fp32>} : vector<16x128xf32>, vector<128x32xf32>, vector<16x32xf32> -> vector<16x32xf32>
    %c0_11 = arith.constant 0 : index
    %c96 = arith.constant 96 : index
    %29 = vector.load %arg5[%c0_11, %c96] : memref<16x128xf32, #tpu.memory_space<vmem>>, vector<16x32xf32>
    tpu.vector_store %arg5[%c0_11, %c96], %28 {strides = array<i32>} : memref<16x128xf32, #tpu.memory_space<vmem>>, vector<16x32xf32>,
    return
  }
  func.func @transform_0(%arg0: i32) -> (i32, i32) {
    %c0_i32 = arith.constant 0 : i32
    %c0_i32_0 = arith.constant 0 : i32
    %c0_i32_1 = arith.constant 0 : i32
    return %c0_i32, %c0_i32_0 : i32, i32
  }
  func.func @transform_1(%arg0: i32) -> (i32, i32) {
    %c0_i32 = arith.constant 0 : i32
    %c0_i32_0 = arith.constant 0 : i32
    %c0_i32_1 = arith.constant 0 : i32
    return %c0_i32, %c0_i32_0 : i32, i32
  }
  func.func @transform_2(%arg0: i32) -> (i32, i32) {
    %c0_i32 = arith.constant 0 : i32
    %c0_i32_0 = arith.constant 0 : i32
    %c0_i32_1 = arith.constant 0 : i32
    return %c0_i32, %c0_i32_0 : i32, i32
  }
  func.func @transform_3(%arg0: i32) -> (i32, i32) {
    %c0_i32 = arith.constant 0 : i32
    %c0_i32_0 = arith.constant 0 : i32
    %c0_i32_1 = arith.constant 0 : i32
    return %c0_i32, %c0_i32_0 : i32, i32
  }
  func.func @transform_4(%arg0: i32) -> (i32, i32) {
    %c0_i32 = arith.constant 0 : i32
    %c0_i32_0 = arith.constant 0 : i32
    return %arg0, %c0_i32 : i32, i32
  }
}

</mosaic_0001>

<llo_original>
// kernel: tpu_custom_call.1
$region0: #{tpu_custom_call.1}
  #allocation0 [shape = 'u32[]', space=smem, size = 0x4, offset = 0x4, fixed_abs, tag = 'smem constant byte address 0x4 - core index']
  #allocation1 [shape = 'u32[144,128]{1,0:T(1,128)}', space=vmem, size = 0x12000, scoped, tag = 'internal scratch']
  %s0 = inlined_call_operand.vmem [shape: s32[16,3], index: 0, kind: input, shape index: {}]
  %s1 = inlined_call_operand.vmem [shape: f32[128,64], index: 1, kind: input, shape index: {}]
  %s2 = inlined_call_operand.vmem [shape: f32[128,32], index: 2, kind: input, shape index: {}]
  %s3 = inlined_call_operand.vmem [shape: f32[128,32], index: 3, kind: input, shape index: {}]
  %s4 = inlined_call_operand.hbm [shape: f32[16,128], index: 4, kind: output, shape index: {}]
  %s5 = sld [smem:[#allocation0]]
  $region26: #{tpu_custom_call.1} parent=0
    _
  %s7 = ssub.s32 1, %s5
  %s8 = scalar_select 0, %s7, %s5
  $region1: #{tpu_custom_call.1} parent=0
    #allocation2 [shape = 'u8[8192]{0}', space=vmem, size = 0x2000, scoped, tag = 'output window, operand 0, single buffered']
    #allocation3 [shape = 's32[1]{0}', space=sflag, size = 0x4, scoped, tag = 'scoped memory for tpu_custom_call.1']
    %9 = vsyncpa [#allocation3], 0
    // Predicated region
    $region2: #{tpu_custom_call.1} parent=1 // pred_check
      _
    $region3: #{tpu_custom_call.1} parent=1 // pred_check_branch
      %11 = sbr.rel (0) target = $region5
    $region4: #{tpu_custom_call.1} parent=1 // pred_region
      _
    $region5: #{tpu_custom_call.1} parent=1 // pred_fallthru
      _
    // Predicated region
    $region6: #{tpu_custom_call.1} parent=1 // pred_check
      _
    $region7: #{tpu_custom_call.1} parent=1 // pred_check_branch
      %13 = sbr.rel (0) target = $region9
    $region8: #{tpu_custom_call.1} parent=1 // pred_region
      _
    $region9: #{tpu_custom_call.1} parent=1 // pred_fallthru
      _
    // Predicated region
    $region10: #{tpu_custom_call.1} parent=1 // pred_check
      _
    $region11: #{tpu_custom_call.1} parent=1 // pred_check_branch
      %15 = sbr.rel (0) target = $region13
    $region12: #{tpu_custom_call.1} parent=1 // pred_region
      _
    $region13: #{tpu_custom_call.1} parent=1 // pred_fallthru
      _
    // Predicated region
    $region14: #{tpu_custom_call.1} parent=1 // pred_check
      _
    $region15: #{tpu_custom_call.1} parent=1 // pred_check_branch
      %17 = sbr.rel (0) target = $region17
    $region16: #{tpu_custom_call.1} parent=1 // pred_region
      _
    $region17: #{tpu_custom_call.1} parent=1 // pred_fallthru
      _
    %s18 = smul.u32 0, 16
    %s19 = scalar_lea.vmem %s0, %s18
    %v20 = vld [vmem:[%s19] sm:$0xff]
    %v21 = vld [vmem:[%s19 + $0x8] sm:$0xff]
    %v22 = vlaneseq
    %v23 = vand.u32 %v22, 127
    %24 = vset.pattern.permute.xlu0 0
    %25 = vperm.xlu0 %24, %v20
    %v26 = vpop.permute.xlu0 %25
    %27 = vset.pattern.permute.xlu0 0
    %28 = vperm.xlu0 %27, %v21
    %v29 = vpop.permute.xlu0 %28
    %vm30 = vcmp.eq.s32.totalorder %v26, %v23
    %vm31 = vcmp.eq.s32.totalorder %v29, %v23
    %v32 = vsel %vm30, 1, 0
    %v33 = vsel %vm31, 1, 0
    %v34 = vcvt.s32.f32 %v32
    %v35 = vcvt.s32.f32 %v33
    %v36 = vld [vmem:[%s1] sm:$0xff]
    %v37 = vld [vmem:[%s1 + $0x8] sm:$0xff]
    %v38 = vld [vmem:[%s1 + $0x10] sm:$0xff]
    %v39 = vld [vmem:[%s1 + $0x18] sm:$0xff]
    %v40 = vld [vmem:[%s1 + $0x20] sm:$0xff]
    %v41 = vld [vmem:[%s1 + $0x28] sm:$0xff]
    %v42 = vld [vmem:[%s1 + $0x30] sm:$0xff]
    %v43 = vld [vmem:[%s1 + $0x38] sm:$0xff]
    %v44 = vld [vmem:[%s1 + $0x40] sm:$0xff]
    %v45 = vld [vmem:[%s1 + $0x48] sm:$0xff]
    %v46 = vld [vmem:[%s1 + $0x50] sm:$0xff]
    %v47 = vld [vmem:[%s1 + $0x58] sm:$0xff]
    %v48 = vld [vmem:[%s1 + $0x60] sm:$0xff]
    %v49 = vld [vmem:[%s1 + $0x68] sm:$0xff]
    %v50 = vld [vmem:[%s1 + $0x70] sm:$0xff]
    %v51 = vld [vmem:[%s1 + $0x78] sm:$0xff]
    %52 = vmatprep.subr.mxu0 0.0
    %v53 = vand.u32 %v51, 4294901760
    %54 = vmatpush1.msra.mxu0 %v53
    %55 = vmatprep.subr.mxu0 0.0
    %v56 = vand.u32 %v50, 4294901760
    %57 = vmatpush1.msra.mxu0 %v56
    %58 = vmatprep.subr.mxu0 0.0
    %v59 = vand.u32 %v49, 4294901760
    %60 = vmatpush1.msra.mxu0 %v59
    %61 = vmatprep.subr.mxu0 0.0
    %v62 = vand.u32 %v48, 4294901760
    %63 = vmatpush1.msra.mxu0 %v62
    %64 = vmatprep.subr.mxu0 0.0
    %v65 = vand.u32 %v47, 4294901760
    %66 = vmatpush1.msra.mxu0 %v65
    %67 = vmatprep.subr.mxu0 0.0
    %v68 = vand.u32 %v46, 4294901760
    %69 = vmatpush1.msra.mxu0 %v68
    %70 = vmatprep.subr.mxu0 0.0
    %v71 = vand.u32 %v45, 4294901760
    %72 = vmatpush1.msra.mxu0 %v71
    %73 = vmatprep.subr.mxu0 0.0
    %v74 = vand.u32 %v44, 4294901760
    %75 = vmatpush1.msra.mxu0 %v74
    %76 = vmatprep.subr.mxu0 0.0
    %v77 = vand.u32 %v43, 4294901760
    %78 = vmatpush1.msra.mxu0 %v77
    %79 = vmatprep.subr.mxu0 0.0
    %v80 = vand.u32 %v42, 4294901760
    %81 = vmatpush1.msra.mxu0 %v80
    %82 = vmatprep.subr.mxu0 0.0
    %v83 = vand.u32 %v41, 4294901760
    %84 = vmatpush1.msra.mxu0 %v83
    %85 = vmatprep.subr.mxu0 0.0
    %v86 = vand.u32 %v40, 4294901760
    %87 = vmatpush1.msra.mxu0 %v86
    %88 = vmatprep.subr.mxu0 0.0
    %v89 = vand.u32 %v39, 4294901760
    %90 = vmatpush1.msra.mxu0 %v89
    %91 = vmatprep.subr.mxu0 0.0
    %v92 = vand.u32 %v38, 4294901760
    %93 = vmatpush1.msra.mxu0 %v92
    %94 = vmatprep.subr.mxu0 0.0
    %v95 = vand.u32 %v37, 4294901760
    %96 = vmatpush1.msra.mxu0 %v95
    %97 = vmatprep.subr.mxu0 0.0
    %v98 = vand.u32 %v36, 4294901760
    %99 = vmatpush1.msra.mxu0 %v98
    %100 = vmatprep.subr.mxu0 0.0
    %101 = vmatpush2.msra.mxu0 0.0
    %102 = vmatprep.subr.mxu0 0.0
    %103 = vmatpush2.msra.mxu0 0.0
    %104 = vmatprep.subr.mxu0 0.0
    %105 = vmatpush2.msra.mxu0 0.0
    %106 = vmatprep.subr.mxu0 0.0
    %107 = vmatpush2.msra.mxu0 0.0
    %108 = vmatprep.subr.mxu0 0.0
    %109 = vmatpush2.msra.mxu0 0.0
    %110 = vmatprep.subr.mxu0 0.0
    %111 = vmatpush2.msra.mxu0 0.0
    %112 = vmatprep.subr.mxu0 0.0
    %113 = vmatpush2.msra.mxu0 0.0
    %114 = vmatprep.subr.mxu0 0.0
    %115 = vmatpush2.msra.mxu0 0.0
    %116 = vmatprep.subr.mxu0 0.0
    %117 = vmatpush2.msra.mxu0 0.0
    %118 = vmatprep.subr.mxu0 0.0
    %119 = vmatpush2.msra.mxu0 0.0
    %120 = vmatprep.subr.mxu0 0.0
    %121 = vmatpush2.msra.mxu0 0.0
    %122 = vmatprep.subr.mxu0 0.0
    %123 = vmatpush2.msra.mxu0 0.0
    %124 = vmatprep.subr.mxu0 0.0
    %125 = vmatpush2.msra.mxu0 0.0
    %126 = vmatprep.subr.mxu0 0.0
    %127 = vmatpush2.msra.mxu0 0.0
    %128 = vmatprep.subr.mxu0 0.0
    %129 = vmatpush2.msra.mxu0 0.0
    %130 = vmatprep.subr.mxu0 0.0
    %131 = vmatpush2.msra.mxu0 0.0
    %132 = vmatprep.mubr.f32.mxu0 0.0
    %v133 = vand.u32 %v34, 4294901760
    %v134 = vsub.f32 %v34, %v133
    %v135 = vand.u32 %v134, 4294901760
    %v136 = vsub.f32 %v134, %v135
    %v137 = vand.u32 %v136, 4294901760
    %138 = vmatmul.mubr.f32.gmra.mxu0 %v137
    %v139 = vpop.f32.mrf.mxu0
    %v140 = vadd.f32 0.0, %v139
    %v141 = vpop.f32.mrf.mxu0
    %142 = vmatprep.mubr.f32.mxu0 0.0
    %v143 = vand.u32 %v35, 4294901760
    %v144 = vsub.f32 %v35, %v143
    %v145 = vand.u32 %v144, 4294901760
    %v146 = vsub.f32 %v144, %v145
    %v147 = vand.u32 %v146, 4294901760
    %148 = vmatmul.mubr.f32.gmra.mxu0 %v147
    %v149 = vpop.f32.mrf.mxu0
    %v150 = vadd.f32 0.0, %v149
    %v151 = vpop.f32.mrf.mxu0
    %152 = vdwg.mxu0
    %153 = vmatprep.subr.mxu0 0.0
    %v154 = vand.u32 %v51, 4294901760
    %v155 = vsub.f32 %v51, %v154
    %v156 = vand.u32 %v155, 4294901760
    %v157 = vsub.f32 %v155, %v156
    %v158 = vand.u32 %v157, 4294901760
    %159 = vmatpush1.msra.mxu0 %v158
    %160 = vmatprep.subr.mxu0 0.0
    %v161 = vand.u32 %v50, 4294901760
    %v162 = vsub.f32 %v50, %v161
    %v163 = vand.u32 %v162, 4294901760
    %v164 = vsub.f32 %v162, %v163
    %v165 = vand.u32 %v164, 4294901760
    %166 = vmatpush1.msra.mxu0 %v165
    %167 = vmatprep.subr.mxu0 0.0
    %v168 = vand.u32 %v49, 4294901760
    %v169 = vsub.f32 %v49, %v168
    %v170 = vand.u32 %v169, 4294901760
    %v171 = vsub.f32 %v169, %v170
    %v172 = vand.u32 %v171, 4294901760
    %173 = vmatpush1.msra.mxu0 %v172
    %174 = vmatprep.subr.mxu0 0.0
    %v175 = vand.u32 %v48, 4294901760
    %v176 = vsub.f32 %v48, %v175
    %v177 = vand.u32 %v176, 4294901760
    %v178 = vsub.f32 %v176, %v177
    %v179 = vand.u32 %v178, 4294901760
    %180 = vmatpush1.msra.mxu0 %v179
    %181 = vmatprep.subr.mxu0 0.0
    %v182 = vand.u32 %v47, 4294901760
    %v183 = vsub.f32 %v47, %v182
    %v184 = vand.u32 %v183, 4294901760
    %v185 = vsub.f32 %v183, %v184
    %v186 = vand.u32 %v185, 4294901760
    %187 = vmatpush1.msra.mxu0 %v186
    %188 = vmatprep.subr.mxu0 0.0
    %v189 = vand.u32 %v46, 4294901760
    %v190 = vsub.f32 %v46, %v189
    %v191 = vand.u32 %v190, 4294901760
    %v192 = vsub.f32 %v190, %v191
    %v193 = vand.u32 %v192, 4294901760
    %194 = vmatpush1.msra.mxu0 %v193
    %195 = vmatprep.subr.mxu0 0.0
    %v196 = vand.u32 %v45, 4294901760
    %v197 = vsub.f32 %v45, %v196
    %v198 = vand.u32 %v197, 4294901760
    %v199 = vsub.f32 %v197, %v198
    %v200 = vand.u32 %v199, 4294901760
    %201 = vmatpush1.msra.mxu0 %v200
    %202 = vmatprep.subr.mxu0 0.0
    %v203 = vand.u32 %v44, 4294901760
    %v204 = vsub.f32 %v44, %v203
    %v205 = vand.u32 %v204, 4294901760
    %v206 = vsub.f32 %v204, %v205
    %v207 = vand.u32 %v206, 4294901760
    %208 = vmatpush1.msra.mxu0 %v207
    %209 = vmatprep.subr.mxu0 0.0
    %v210 = vand.u32 %v43, 4294901760
    %v211 = vsub.f32 %v43, %v210
    %v212 = vand.u32 %v211, 4294901760
    %v213 = vsub.f32 %v211, %v212
    %v214 = vand.u32 %v213, 4294901760
    %215 = vmatpush1.msra.mxu0 %v214
    %216 = vmatprep.subr.mxu0 0.0
    %v217 = vand.u32 %v42, 4294901760
    %v218 = vsub.f32 %v42, %v217
    %v219 = vand.u32 %v218, 4294901760
    %v220 = vsub.f32 %v218, %v219
    %v221 = vand.u32 %v220, 4294901760
    %222 = vmatpush1.msra.mxu0 %v221
    %223 = vmatprep.subr.mxu0 0.0
    %v224 = vand.u32 %v41, 4294901760
    %v225 = vsub.f32 %v41, %v224
    %v226 = vand.u32 %v225, 4294901760
    %v227 = vsub.f32 %v225, %v226
    %v228 = vand.u32 %v227, 4294901760
    %229 = vmatpush1.msra.mxu0 %v228
    %230 = vmatprep.subr.mxu0 0.0
    %v231 = vand.u32 %v40, 4294901760
    %v232 = vsub.f32 %v40, %v231
    %v233 = vand.u32 %v232, 4294901760
    %v234 = vsub.f32 %v232, %v233
    %v235 = vand.u32 %v234, 4294901760
    %236 = vmatpush1.msra.mxu0 %v235
    %237 = vmatprep.subr.mxu0 0.0
    %v238 = vand.u32 %v39, 4294901760
    %v239 = vsub.f32 %v39, %v238
    %v240 = vand.u32 %v239, 4294901760
    %v241 = vsub.f32 %v239, %v240
    %v242 = vand.u32 %v241, 4294901760
    %243 = vmatpush1.msra.mxu0 %v242
    %244 = vmatprep.subr.mxu0 0.0
    %v245 = vand.u32 %v38, 4294901760
    %v246 = vsub.f32 %v38, %v245
    %v247 = vand.u32 %v246, 4294901760
    %v248 = vsub.f32 %v246, %v247
    %v249 = vand.u32 %v248, 4294901760
    %250 = vmatpush1.msra.mxu0 %v249
    %251 = vmatprep.subr.mxu0 0.0
    %v252 = vand.u32 %v37, 4294901760
    %v253 = vsub.f32 %v37, %v252
    %v254 = vand.u32 %v253, 4294901760
    %v255 = vsub.f32 %v253, %v254
    %v256 = vand.u32 %v255, 4294901760
    %257 = vmatpush1.msra.mxu0 %v256
    %258 = vmatprep.subr.mxu0 0.0
    %v259 = vand.u32 %v36, 4294901760
    %v260 = vsub.f32 %v36, %v259
    %v261 = vand.u32 %v260, 4294901760
    %v262 = vsub.f32 %v260, %v261
    %v263 = vand.u32 %v262, 4294901760
    %264 = vmatpush1.msra.mxu0 %v263
    %265 = vmatprep.subr.mxu0 0.0
    %266 = vmatpush2.msra.mxu0 0.0
    %267 = vmatprep.subr.mxu0 0.0
    %268 = vmatpush2.msra.mxu0 0.0
    %269 = vmatprep.subr.mxu0 0.0
    %270 = vmatpush2.msra.mxu0 0.0
    %271 = vmatprep.subr.mxu0 0.0
    %272 = vmatpush2.msra.mxu0 0.0
    %273 = vmatprep.subr.mxu0 0.0
    %274 = vmatpush2.msra.mxu0 0.0
    %275 = vmatprep.subr.mxu0 0.0
    %276 = vmatpush2.msra.mxu0 0.0
    %277 = vmatprep.subr.mxu0 0.0
    %278 = vmatpush2.msra.mxu0 0.0
    %279 = vmatprep.subr.mxu0 0.0
    %280 = vmatpush2.msra.mxu0 0.0
    %281 = vmatprep.subr.mxu0 0.0
    %282 = vmatpush2.msra.mxu0 0.0
    %283 = vmatprep.subr.mxu0 0.0
    %284 = vmatpush2.msra.mxu0 0.0
    %285 = vmatprep.subr.mxu0 0.0
    %286 = vmatpush2.msra.mxu0 0.0
    %287 = vmatprep.subr.mxu0 0.0
    %288 = vmatpush2.msra.mxu0 0.0
    %289 = vmatprep.subr.mxu0 0.0
    %290 = vmatpush2.msra.mxu0 0.0
    %291 = vmatprep.subr.mxu0 0.0
    %292 = vmatpush2.msra.mxu0 0.0
    %293 = vmatprep.subr.mxu0 0.0
    %294 = vmatpush2.msra.mxu0 0.0
    %295 = vmatprep.subr.mxu0 0.0
    %296 = vmatpush2.msra.mxu0 0.0
    %297 = vmatprep.mubr.f32.mxu0 0.0
    %v298 = vand.u32 %v34, 4294901760
    %299 = vmatmul.mubr.f32.gmra.mxu0 %v298
    %v300 = vpop.f32.mrf.mxu0
    %v301 = vadd.f32 %v140, %v300
    %v302 = vpop.f32.mrf.mxu0
    %303 = vmatprep.mubr.f32.mxu0 0.0
    %v304 = vand.u32 %v35, 4294901760
    %305 = vmatmul.mubr.f32.gmra.mxu0 %v304
    %v306 = vpop.f32.mrf.mxu0
    %v307 = vadd.f32 %v150, %v306
    %v308 = vpop.f32.mrf.mxu0
    %309 = vdwg.mxu0
    %310 = vmatprep.subr.mxu0 0.0
    %v311 = vand.u32 %v51, 4294901760
    %v312 = vsub.f32 %v51, %v311
    %313 = vmatpush1.msra.mxu0 %v312
    %314 = vmatprep.subr.mxu0 0.0
    %v315 = vand.u32 %v50, 4294901760
    %v316 = vsub.f32 %v50, %v315
    %317 = vmatpush1.msra.mxu0 %v316
    %318 = vmatprep.subr.mxu0 0.0
    %v319 = vand.u32 %v49, 4294901760
    %v320 = vsub.f32 %v49, %v319
    %321 = vmatpush1.msra.mxu0 %v320
    %322 = vmatprep.subr.mxu0 0.0
    %v323 = vand.u32 %v48, 4294901760
    %v324 = vsub.f32 %v48, %v323
    %325 = vmatpush1.msra.mxu0 %v324
    %326 = vmatprep.subr.mxu0 0.0
    %v327 = vand.u32 %v47, 4294901760
    %v328 = vsub.f32 %v47, %v327
    %329 = vmatpush1.msra.mxu0 %v328
    %330 = vmatprep.subr.mxu0 0.0
    %v331 = vand.u32 %v46, 4294901760
    %v332 = vsub.f32 %v46, %v331
    %333 = vmatpush1.msra.mxu0 %v332
    %334 = vmatprep.subr.mxu0 0.0
    %v335 = vand.u32 %v45, 4294901760
    %v336 = vsub.f32 %v45, %v335
    %337 = vmatpush1.msra.mxu0 %v336
    %338 = vmatprep.subr.mxu0 0.0
    %v339 = vand.u32 %v44, 4294901760
    %v340 = vsub.f32 %v44, %v339
    %341 = vmatpush1.msra.mxu0 %v340
    %342 = vmatprep.subr.mxu0 0.0
    %v343 = vand.u32 %v43, 4294901760
    %v344 = vsub.f32 %v43, %v343
    %345 = vmatpush1.msra.mxu0 %v344
    %346 = vmatprep.subr.mxu0 0.0
    %v347 = vand.u32 %v42, 4294901760
    %v348 = vsub.f32 %v42, %v347
    %349 = vmatpush1.msra.mxu0 %v348
    %350 = vmatprep.subr.mxu0 0.0
    %v351 = vand.u32 %v41, 4294901760
    %v352 = vsub.f32 %v41, %v351
    %353 = vmatpush1.msra.mxu0 %v352
    %354 = vmatprep.subr.mxu0 0.0
    %v355 = vand.u32 %v40, 4294901760
    %v356 = vsub.f32 %v40, %v355
    %357 = vmatpush1.msra.mxu0 %v356
    %358 = vmatprep.subr.mxu0 0.0
    %v359 = vand.u32 %v39, 4294901760
    %v360 = vsub.f32 %v39, %v359
    %361 = vmatpush1.msra.mxu0 %v360
    %362 = vmatprep.subr.mxu0 0.0
    %v363 = vand.u32 %v38, 4294901760
    %v364 = vsub.f32 %v38, %v363
    %365 = vmatpush1.msra.mxu0 %v364
    %366 = vmatprep.subr.mxu0 0.0
    %v367 = vand.u32 %v37, 4294901760
    %v368 = vsub.f32 %v37, %v367
    %369 = vmatpush1.msra.mxu0 %v368
    %370 = vmatprep.subr.mxu0 0.0
    %v371 = vand.u32 %v36, 4294901760
    %v372 = vsub.f32 %v36, %v371
    %373 = vmatpush1.msra.mxu0 %v372
    %374 = vmatprep.subr.mxu0 0.0
    %375 = vmatpush2.msra.mxu0 0.0
    %376 = vmatprep.subr.mxu0 0.0
    %377 = vmatpush2.msra.mxu0 0.0
    %378 = vmatprep.subr.mxu0 0.0
    %379 = vmatpush2.msra.mxu0 0.0
    %380 = vmatprep.subr.mxu0 0.0
    %381 = vmatpush2.msra.mxu0 0.0
    %382 = vmatprep.subr.mxu0 0.0
    %383 = vmatpush2.msra.mxu0 0.0
    %384 = vmatprep.subr.mxu0 0.0
    %385 = vmatpush2.msra.mxu0 0.0
    %386 = vmatprep.subr.mxu0 0.0
    %387 = vmatpush2.msra.mxu0 0.0
    %388 = vmatprep.subr.mxu0 0.0
    %389 = vmatpush2.msra.mxu0 0.0
    %390 = vmatprep.subr.mxu0 0.0
    %391 = vmatpush2.msra.mxu0 0.0
    %392 = vmatprep.subr.mxu0 0.0
    %393 = vmatpush2.msra.mxu0 0.0
    %394 = vmatprep.subr.mxu0 0.0
    %395 = vmatpush2.msra.mxu0 0.0
    %396 = vmatprep.subr.mxu0 0.0
    %397 = vmatpush2.msra.mxu0 0.0
    %398 = vmatprep.subr.mxu0 0.0
    %399 = vmatpush2.msra.mxu0 0.0
    %400 = vmatprep.subr.mxu0 0.0
    %401 = vmatpush2.msra.mxu0 0.0
    %402 = vmatprep.subr.mxu0 0.0
    %403 = vmatpush2.msra.mxu0 0.0
    %404 = vmatprep.subr.mxu0 0.0
    %405 = vmatpush2.msra.mxu0 0.0
    %406 = vmatprep.mubr.f32.mxu0 0.0
    %v407 = vand.u32 %v34, 4294901760
    %v408 = vsub.f32 %v34, %v407
    %409 = vmatmul.mubr.f32.gmra.mxu0 %v408
    %v410 = vpop.f32.mrf.mxu0
    %v411 = vadd.f32 %v301, %v410
    %v412 = vpop.f32.mrf.mxu0
    %413 = vmatprep.mubr.f32.mxu0 0.0
    %v414 = vand.u32 %v35, 4294901760
    %v415 = vsub.f32 %v35, %v414
    %416 = vmatmul.mubr.f32.gmra.mxu0 %v415
    %v417 = vpop.f32.mrf.mxu0
    %v418 = vadd.f32 %v307, %v417
    %v419 = vpop.f32.mrf.mxu0
    %420 = vdwg.mxu0
    %421 = vmatprep.subr.mxu0 0.0
    %v422 = vand.u32 %v51, 4294901760
    %423 = vmatpush1.msra.mxu0 %v422
    %424 = vmatprep.subr.mxu0 0.0
    %v425 = vand.u32 %v50, 4294901760
    %426 = vmatpush1.msra.mxu0 %v425
    %427 = vmatprep.subr.mxu0 0.0
    %v428 = vand.u32 %v49, 4294901760
    %429 = vmatpush1.msra.mxu0 %v428
    %430 = vmatprep.subr.mxu0 0.0
    %v431 = vand.u32 %v48, 4294901760
    %432 = vmatpush1.msra.mxu0 %v431
    %433 = vmatprep.subr.mxu0 0.0
    %v434 = vand.u32 %v47, 4294901760
    %435 = vmatpush1.msra.mxu0 %v434
    %436 = vmatprep.subr.mxu0 0.0
    %v437 = vand.u32 %v46, 4294901760
    %438 = vmatpush1.msra.mxu0 %v437
    %439 = vmatprep.subr.mxu0 0.0
    %v440 = vand.u32 %v45, 4294901760
    %441 = vmatpush1.msra.mxu0 %v440
    %442 = vmatprep.subr.mxu0 0.0
    %v443 = vand.u32 %v44, 4294901760
    %444 = vmatpush1.msra.mxu0 %v443
    %445 = vmatprep.subr.mxu0 0.0
    %v446 = vand.u32 %v43, 4294901760
    %447 = vmatpush1.msra.mxu0 %v446
    %448 = vmatprep.subr.mxu0 0.0
    %v449 = vand.u32 %v42, 4294901760
    %450 = vmatpush1.msra.mxu0 %v449
    %451 = vmatprep.subr.mxu0 0.0
    %v452 = vand.u32 %v41, 4294901760
    %453 = vmatpush1.msra.mxu0 %v452
    %454 = vmatprep.subr.mxu0 0.0
    %v455 = vand.u32 %v40, 4294901760
    %456 = vmatpush1.msra.mxu0 %v455
    %457 = vmatprep.subr.mxu0 0.0
    %v458 = vand.u32 %v39, 4294901760
    %459 = vmatpush1.msra.mxu0 %v458
    %460 = vmatprep.subr.mxu0 0.0
    %v461 = vand.u32 %v38, 4294901760
    %462 = vmatpush1.msra.mxu0 %v461
    %463 = vmatprep.subr.mxu0 0.0
    %v464 = vand.u32 %v37, 4294901760
    %465 = vmatpush1.msra.mxu0 %v464
    %466 = vmatprep.subr.mxu0 0.0
    %v467 = vand.u32 %v36, 4294901760
    %468 = vmatpush1.msra.mxu0 %v467
    %469 = vmatprep.subr.mxu0 0.0
    %470 = vmatpush2.msra.mxu0 0.0
    %471 = vmatprep.subr.mxu0 0.0
    %472 = vmatpush2.msra.mxu0 0.0
    %473 = vmatprep.subr.mxu0 0.0
    %474 = vmatpush2.msra.mxu0 0.0
    %475 = vmatprep.subr.mxu0 0.0
    %476 = vmatpush2.msra.mxu0 0.0
    %477 = vmatprep.subr.mxu0 0.0
    %478 = vmatpush2.msra.mxu0 0.0
    %479 = vmatprep.subr.mxu0 0.0
    %480 = vmatpush2.msra.mxu0 0.0
    %481 = vmatprep.subr.mxu0 0.0
    %482 = vmatpush2.msra.mxu0 0.0
    %483 = vmatprep.subr.mxu0 0.0
    %484 = vmatpush2.msra.mxu0 0.0
    %485 = vmatprep.subr.mxu0 0.0
    %486 = vmatpush2.msra.mxu0 0.0
    %487 = vmatprep.subr.mxu0 0.0
    %488 = vmatpush2.msra.mxu0 0.0
    %489 = vmatprep.subr.mxu0 0.0
    %490 = vmatpush2.msra.mxu0 0.0
    %491 = vmatprep.subr.mxu0 0.0
    %492 = vmatpush2.msra.mxu0 0.0
    %493 = vmatprep.subr.mxu0 0.0
    %494 = vmatpush2.msra.mxu0 0.0
    %495 = vmatprep.subr.mxu0 0.0
    %496 = vmatpush2.msra.mxu0 0.0
    %497 = vmatprep.subr.mxu0 0.0
    %498 = vmatpush2.msra.mxu0 0.0
    %499 = vmatprep.subr.mxu0 0.0
    %500 = vmatpush2.msra.mxu0 0.0
    %501 = vmatprep.mubr.f32.mxu0 0.0
    %v502 = vand.u32 %v34, 4294901760
    %v503 = vsub.f32 %v34, %v502
    %v504 = vand.u32 %v503, 4294901760
    %505 = vmatmul.mubr.f32.gmra.mxu0 %v504
    %v506 = vpop.f32.mrf.mxu0
    %v507 = vadd.f32 %v411, %v506
    %v508 = vpop.f32.mrf.mxu0
    %509 = vmatprep.mubr.f32.mxu0 0.0
    %v510 = vand.u32 %v35, 4294901760
    %v511 = vsub.f32 %v35, %v510
    %v512 = vand.u32 %v511, 4294901760
    %513 = vmatmul.mubr.f32.gmra.mxu0 %v512
    %v514 = vpop.f32.mrf.mxu0
    %v515 = vadd.f32 %v418, %v514
    %v516 = vpop.f32.mrf.mxu0
    %517 = vdwg.mxu0
    %518 = vmatprep.subr.mxu0 0.0
    %v519 = vand.u32 %v51, 4294901760
    %v520 = vsub.f32 %v51, %v519
    %v521 = vand.u32 %v520, 4294901760
    %522 = vmatpush1.msra.mxu0 %v521
    %523 = vmatprep.subr.mxu0 0.0
    %v524 = vand.u32 %v50, 4294901760
    %v525 = vsub.f32 %v50, %v524
    %v526 = vand.u32 %v525, 4294901760
    %527 = vmatpush1.msra.mxu0 %v526
    %528 = vmatprep.subr.mxu0 0.0
    %v529 = vand.u32 %v49, 4294901760
    %v530 = vsub.f32 %v49, %v529
    %v531 = vand.u32 %v530, 4294901760
    %532 = vmatpush1.msra.mxu0 %v531
    %533 = vmatprep.subr.mxu0 0.0
    %v534 = vand.u32 %v48, 4294901760
    %v535 = vsub.f32 %v48, %v534
    %v536 = vand.u32 %v535, 4294901760
    %537 = vmatpush1.msra.mxu0 %v536
    %538 = vmatprep.subr.mxu0 0.0
    %v539 = vand.u32 %v47, 4294901760
    %v540 = vsub.f32 %v47, %v539
    %v541 = vand.u32 %v540, 4294901760
    %542 = vmatpush1.msra.mxu0 %v541
    %543 = vmatprep.subr.mxu0 0.0
    %v544 = vand.u32 %v46, 4294901760
    %v545 = vsub.f32 %v46, %v544
    %v546 = vand.u32 %v545, 4294901760
    %547 = vmatpush1.msra.mxu0 %v546
    %548 = vmatprep.subr.mxu0 0.0
    %v549 = vand.u32 %v45, 4294901760
    %v550 = vsub.f32 %v45, %v549
    %v551 = vand.u32 %v550, 4294901760
    %552 = vmatpush1.msra.mxu0 %v551
    %553 = vmatprep.subr.mxu0 0.0
    %v554 = vand.u32 %v44, 4294901760
    %v555 = vsub.f32 %v44, %v554
    %v556 = vand.u32 %v555, 4294901760
    %557 = vmatpush1.msra.mxu0 %v556
    %558 = vmatprep.subr.mxu0 0.0
    %v559 = vand.u32 %v43, 4294901760
    %v560 = vsub.f32 %v43, %v559
    %v561 = vand.u32 %v560, 4294901760
    %562 = vmatpush1.msra.mxu0 %v561
    %563 = vmatprep.subr.mxu0 0.0
    %v564 = vand.u32 %v42, 4294901760
    %v565 = vsub.f32 %v42, %v564
    %v566 = vand.u32 %v565, 4294901760
    %567 = vmatpush1.msra.mxu0 %v566
    %568 = vmatprep.subr.mxu0 0.0
    %v569 = vand.u32 %v41, 4294901760
    %v570 = vsub.f32 %v41, %v569
    %v571 = vand.u32 %v570, 4294901760
    %572 = vmatpush1.msra.mxu0 %v571
    %573 = vmatprep.subr.mxu0 0.0
    %v574 = vand.u32 %v40, 4294901760
    %v575 = vsub.f32 %v40, %v574
    %v576 = vand.u32 %v575, 4294901760
    %577 = vmatpush1.msra.mxu0 %v576
    %578 = vmatprep.subr.mxu0 0.0
    %v579 = vand.u32 %v39, 4294901760
    %v580 = vsub.f32 %v39, %v579
    %v581 = vand.u32 %v580, 4294901760
    %582 = vmatpush1.msra.mxu0 %v581
    %583 = vmatprep.subr.mxu0 0.0
    %v584 = vand.u32 %v38, 4294901760
    %v585 = vsub.f32 %v38, %v584
    %v586 = vand.u32 %v585, 4294901760
    %587 = vmatpush1.msra.mxu0 %v586
    %588 = vmatprep.subr.mxu0 0.0
    %v589 = vand.u32 %v37, 4294901760
    %v590 = vsub.f32 %v37, %v589
    %v591 = vand.u32 %v590, 4294901760
    %592 = vmatpush1.msra.mxu0 %v591
    %593 = vmatprep.subr.mxu0 0.0
    %v594 = vand.u32 %v36, 4294901760
    %v595 = vsub.f32 %v36, %v594
    %v596 = vand.u32 %v595, 4294901760
    %597 = vmatpush1.msra.mxu0 %v596
    %598 = vmatprep.subr.mxu0 0.0
    %599 = vmatpush2.msra.mxu0 0.0
    %600 = vmatprep.subr.mxu0 0.0
    %601 = vmatpush2.msra.mxu0 0.0
    %602 = vmatprep.subr.mxu0 0.0
    %603 = vmatpush2.msra.mxu0 0.0
    %604 = vmatprep.subr.mxu0 0.0
    %605 = vmatpush2.msra.mxu0 0.0
    %606 = vmatprep.subr.mxu0 0.0
    %607 = vmatpush2.msra.mxu0 0.0
    %608 = vmatprep.subr.mxu0 0.0
    %609 = vmatpush2.msra.mxu0 0.0
    %610 = vmatprep.subr.mxu0 0.0
    %611 = vmatpush2.msra.mxu0 0.0
    %612 = vmatprep.subr.mxu0 0.0
    %613 = vmatpush2.msra.mxu0 0.0
    %614 = vmatprep.subr.mxu0 0.0
    %615 = vmatpush2.msra.mxu0 0.0
    %616 = vmatprep.subr.mxu0 0.0
    %617 = vmatpush2.msra.mxu0 0.0
    %618 = vmatprep.subr.mxu0 0.0
    %619 = vmatpush2.msra.mxu0 0.0
    %620 = vmatprep.subr.mxu0 0.0
    %621 = vmatpush2.msra.mxu0 0.0
    %622 = vmatprep.subr.mxu0 0.0
    %623 = vmatpush2.msra.mxu0 0.0
    %624 = vmatprep.subr.mxu0 0.0
    %625 = vmatpush2.msra.mxu0 0.0
    %626 = vmatprep.subr.mxu0 0.0
    %627 = vmatpush2.msra.mxu0 0.0
    %628 = vmatprep.subr.mxu0 0.0
    %629 = vmatpush2.msra.mxu0 0.0
    %630 = vmatprep.mubr.f32.mxu0 0.0
    %v631 = vand.u32 %v34, 4294901760
    %632 = vmatmul.mubr.f32.gmra.mxu0 %v631
    %v633 = vpop.f32.mrf.mxu0
    %v634 = vadd.f32 %v507, %v633
    %v635 = vpop.f32.mrf.mxu0
    %636 = vmatprep.mubr.f32.mxu0 0.0
    %v637 = vand.u32 %v35, 4294901760
    %638 = vmatmul.mubr.f32.gmra.mxu0 %v637
    %v639 = vpop.f32.mrf.mxu0
    %v640 = vadd.f32 %v515, %v639
    %v641 = vpop.f32.mrf.mxu0
    %642 = vdwg.mxu0
    %643 = vmatprep.subr.mxu0 0.0
    %v644 = vand.u32 %v51, 4294901760
    %645 = vmatpush1.msra.mxu0 %v644
    %646 = vmatprep.subr.mxu0 0.0
    %v647 = vand.u32 %v50, 4294901760
    %648 = vmatpush1.msra.mxu0 %v647
    %649 = vmatprep.subr.mxu0 0.0
    %v650 = vand.u32 %v49, 4294901760
    %651 = vmatpush1.msra.mxu0 %v650
    %652 = vmatprep.subr.mxu0 0.0
    %v653 = vand.u32 %v48, 4294901760
    %654 = vmatpush1.msra.mxu0 %v653
    %655 = vmatprep.subr.mxu0 0.0
    %v656 = vand.u32 %v47, 4294901760
    %657 = vmatpush1.msra.mxu0 %v656
    %658 = vmatprep.subr.mxu0 0.0
    %v659 = vand.u32 %v46, 4294901760
    %660 = vmatpush1.msra.mxu0 %v659
    %661 = vmatprep.subr.mxu0 0.0
    %v662 = vand.u32 %v45, 4294901760
    %663 = vmatpush1.msra.mxu0 %v662
    %664 = vmatprep.subr.mxu0 0.0
    %v665 = vand.u32 %v44, 4294901760
    %666 = vmatpush1.msra.mxu0 %v665
    %667 = vmatprep.subr.mxu0 0.0
    %v668 = vand.u32 %v43, 4294901760
    %669 = vmatpush1.msra.mxu0 %v668
    %670 = vmatprep.subr.mxu0 0.0
    %v671 = vand.u32 %v42, 4294901760
    %672 = vmatpush1.msra.mxu0 %v671
    %673 = vmatprep.subr.mxu0 0.0
    %v674 = vand.u32 %v41, 4294901760
    %675 = vmatpush1.msra.mxu0 %v674
    %676 = vmatprep.subr.mxu0 0.0
    %v677 = vand.u32 %v40, 4294901760
    %678 = vmatpush1.msra.mxu0 %v677
    %679 = vmatprep.subr.mxu0 0.0
    %v680 = vand.u32 %v39, 4294901760
    %681 = vmatpush1.msra.mxu0 %v680
    %682 = vmatprep.subr.mxu0 0.0
    %v683 = vand.u32 %v38, 4294901760
    %684 = vmatpush1.msra.mxu0 %v683
    %685 = vmatprep.subr.mxu0 0.0
    %v686 = vand.u32 %v37, 4294901760
    %687 = vmatpush1.msra.mxu0 %v686
    %688 = vmatprep.subr.mxu0 0.0
    %v689 = vand.u32 %v36, 4294901760
    %690 = vmatpush1.msra.mxu0 %v689
    %691 = vmatprep.subr.mxu0 0.0
    %692 = vmatpush2.msra.mxu0 0.0
    %693 = vmatprep.subr.mxu0 0.0
    %694 = vmatpush2.msra.mxu0 0.0
    %695 = vmatprep.subr.mxu0 0.0
    %696 = vmatpush2.msra.mxu0 0.0
    %697 = vmatprep.subr.mxu0 0.0
    %698 = vmatpush2.msra.mxu0 0.0
    %699 = vmatprep.subr.mxu0 0.0
    %700 = vmatpush2.msra.mxu0 0.0
    %701 = vmatprep.subr.mxu0 0.0
    %702 = vmatpush2.msra.mxu0 0.0
    %703 = vmatprep.subr.mxu0 0.0
    %704 = vmatpush2.msra.mxu0 0.0
    %705 = vmatprep.subr.mxu0 0.0
    %706 = vmatpush2.msra.mxu0 0.0
    %707 = vmatprep.subr.mxu0 0.0
    %708 = vmatpush2.msra.mxu0 0.0
    %709 = vmatprep.subr.mxu0 0.0
    %710 = vmatpush2.msra.mxu0 0.0
    %711 = vmatprep.subr.mxu0 0.0
    %712 = vmatpush2.msra.mxu0 0.0
    %713 = vmatprep.subr.mxu0 0.0
    %714 = vmatpush2.msra.mxu0 0.0
    %715 = vmatprep.subr.mxu0 0.0
    %716 = vmatpush2.msra.mxu0 0.0
    %717 = vmatprep.subr.mxu0 0.0
    %718 = vmatpush2.msra.mxu0 0.0
    %719 = vmatprep.subr.mxu0 0.0
    %720 = vmatpush2.msra.mxu0 0.0
    %721 = vmatprep.subr.mxu0 0.0
    %722 = vmatpush2.msra.mxu0 0.0
    %723 = vmatprep.mubr.f32.mxu0 0.0
    %v724 = vand.u32 %v34, 4294901760
    %725 = vmatmul.mubr.f32.gmra.mxu0 %v724
    %v726 = vpop.f32.mrf.mxu0
    %v727 = vadd.f32 %v634, %v726
    %v728 = vpop.f32.mrf.mxu0
    %729 = vmatprep.mubr.f32.mxu0 0.0
    %v730 = vand.u32 %v35, 4294901760
    %731 = vmatmul.mubr.f32.gmra.mxu0 %v730
    %v732 = vpop.f32.mrf.mxu0
    %v733 = vadd.f32 %v640, %v732
    %v734 = vpop.f32.mrf.mxu0
    %735 = vdwg.mxu0
    %vm736 = vcmask 523264
    %737 = vst.msk [vmem:[#allocation2] sm:$0xff] %vm736, %v727
    %738 = vst.msk [vmem:[#allocation2 + $0x8] sm:$0xff] %vm736, %v733
    %739 = vset.pattern.permute.xlu0 1
    %740 = vperm.xlu0 %739, %v20
    %v741 = vpop.permute.xlu0 %740
    %742 = vset.pattern.permute.xlu0 1
    %743 = vperm.xlu0 %742, %v21
    %v744 = vpop.permute.xlu0 %743
    %vm745 = vcmp.eq.s32.totalorder %v741, %v23
    %vm746 = vcmp.eq.s32.totalorder %v744, %v23
    %v747 = vsel %vm745, 1, 0
    %v748 = vsel %vm746, 1, 0
    %v749 = vcvt.s32.f32 %v747
    %v750 = vcvt.s32.f32 %v748
    %v751 = vld [vmem:[%s2] sm:$0xff]
    %v752 = vld [vmem:[%s2 + $0x8] sm:$0xff]
    %v753 = vld [vmem:[%s2 + $0x10] sm:$0xff]
    %v754 = vld [vmem:[%s2 + $0x18] sm:$0xff]
    %v755 = vld [vmem:[%s2 + $0x20] sm:$0xff]
    %v756 = vld [vmem:[%s2 + $0x28] sm:$0xff]
    %v757 = vld [vmem:[%s2 + $0x30] sm:$0xff]
    %v758 = vld [vmem:[%s2 + $0x38] sm:$0xff]
    %v759 = vld [vmem:[%s2 + $0x40] sm:$0xff]
    %v760 = vld [vmem:[%s2 + $0x48] sm:$0xff]
    %v761 = vld [vmem:[%s2 + $0x50] sm:$0xff]
    %v762 = vld [vmem:[%s2 + $0x58] sm:$0xff]
    %v763 = vld [vmem:[%s2 + $0x60] sm:$0xff]
    %v764 = vld [vmem:[%s2 + $0x68] sm:$0xff]
    %v765 = vld [vmem:[%s2 + $0x70] sm:$0xff]
    %v766 = vld [vmem:[%s2 + $0x78] sm:$0xff]
    %767 = vmatprep.subr.mxu0 0.0
    %v768 = vand.u32 %v766, 4294901760
    %769 = vmatpush1.msra.mxu0 %v768
    %770 = vmatprep.subr.mxu0 0.0
    %v771 = vand.u32 %v765, 4294901760
    %772 = vmatpush1.msra.mxu0 %v771
    %773 = vmatprep.subr.mxu0 0.0
    %v774 = vand.u32 %v764, 4294901760
    %775 = vmatpush1.msra.mxu0 %v774
    %776 = vmatprep.subr.mxu0 0.0
    %v777 = vand.u32 %v763, 4294901760
    %778 = vmatpush1.msra.mxu0 %v777
    %779 = vmatprep.subr.mxu0 0.0
    %v780 = vand.u32 %v762, 4294901760
    %781 = vmatpush1.msra.mxu0 %v780
    %782 = vmatprep.subr.mxu0 0.0
    %v783 = vand.u32 %v761, 4294901760
    %784 = vmatpush1.msra.mxu0 %v783
    %785 = vmatprep.subr.mxu0 0.0
    %v786 = vand.u32 %v760, 4294901760
    %787 = vmatpush1.msra.mxu0 %v786
    %788 = vmatprep.subr.mxu0 0.0
    %v789 = vand.u32 %v759, 4294901760
    %790 = vmatpush1.msra.mxu0 %v789
    %791 = vmatprep.subr.mxu0 0.0
    %v792 = vand.u32 %v758, 4294901760
    %793 = vmatpush1.msra.mxu0 %v792
    %794 = vmatprep.subr.mxu0 0.0
    %v795 = vand.u32 %v757, 4294901760
    %796 = vmatpush1.msra.mxu0 %v795
    %797 = vmatprep.subr.mxu0 0.0
    %v798 = vand.u32 %v756, 4294901760
    %799 = vmatpush1.msra.mxu0 %v798
    %800 = vmatprep.subr.mxu0 0.0
    %v801 = vand.u32 %v755, 4294901760
    %802 = vmatpush1.msra.mxu0 %v801
    %803 = vmatprep.subr.mxu0 0.0
    %v804 = vand.u32 %v754, 4294901760
    %805 = vmatpush1.msra.mxu0 %v804
    %806 = vmatprep.subr.mxu0 0.0
    %v807 = vand.u32 %v753, 4294901760
    %808 = vmatpush1.msra.mxu0 %v807
    %809 = vmatprep.subr.mxu0 0.0
    %v810 = vand.u32 %v752, 4294901760
    %811 = vmatpush1.msra.mxu0 %v810
    %812 = vmatprep.subr.mxu0 0.0
    %v813 = vand.u32 %v751, 4294901760
    %814 = vmatpush1.msra.mxu0 %v813
    %815 = vmatprep.subr.mxu0 0.0
    %816 = vmatpush2.msra.mxu0 0.0
    %817 = vmatprep.subr.mxu0 0.0
    %818 = vmatpush2.msra.mxu0 0.0
    %819 = vmatprep.subr.mxu0 0.0
    %820 = vmatpush2.msra.mxu0 0.0
    %821 = vmatprep.subr.mxu0 0.0
    %822 = vmatpush2.msra.mxu0 0.0
    %823 = vmatprep.subr.mxu0 0.0
    %824 = vmatpush2.msra.mxu0 0.0
    %825 = vmatprep.subr.mxu0 0.0
    %826 = vmatpush2.msra.mxu0 0.0
    %827 = vmatprep.subr.mxu0 0.0
    %828 = vmatpush2.msra.mxu0 0.0
    %829 = vmatprep.subr.mxu0 0.0
    %830 = vmatpush2.msra.mxu0 0.0
    %831 = vmatprep.subr.mxu0 0.0
    %832 = vmatpush2.msra.mxu0 0.0
    %833 = vmatprep.subr.mxu0 0.0
    %834 = vmatpush2.msra.mxu0 0.0
    %835 = vmatprep.subr.mxu0 0.0
    %836 = vmatpush2.msra.mxu0 0.0
    %837 = vmatprep.subr.mxu0 0.0
    %838 = vmatpush2.msra.mxu0 0.0
    %839 = vmatprep.subr.mxu0 0.0
    %840 = vmatpush2.msra.mxu0 0.0
    %841 = vmatprep.subr.mxu0 0.0
    %842 = vmatpush2.msra.mxu0 0.0
    %843 = vmatprep.subr.mxu0 0.0
    %844 = vmatpush2.msra.mxu0 0.0
    %845 = vmatprep.subr.mxu0 0.0
    %846 = vmatpush2.msra.mxu0 0.0
    %847 = vmatprep.mubr.f32.mxu0 0.0
    %v848 = vand.u32 %v749, 4294901760
    %v849 = vsub.f32 %v749, %v848
    %v850 = vand.u32 %v849, 4294901760
    %v851 = vsub.f32 %v849, %v850
    %v852 = vand.u32 %v851, 4294901760
    %853 = vmatmul.mubr.f32.gmra.mxu0 %v852
    %v854 = vpop.f32.mrf.mxu0
    %v855 = vadd.f32 0.0, %v854
    %v856 = vpop.f32.mrf.mxu0
    %857 = vmatprep.mubr.f32.mxu0 0.0
    %v858 = vand.u32 %v750, 4294901760
    %v859 = vsub.f32 %v750, %v858
    %v860 = vand.u32 %v859, 4294901760
    %v861 = vsub.f32 %v859, %v860
    %v862 = vand.u32 %v861, 4294901760
    %863 = vmatmul.mubr.f32.gmra.mxu0 %v862
    %v864 = vpop.f32.mrf.mxu0
    %v865 = vadd.f32 0.0, %v864
    %v866 = vpop.f32.mrf.mxu0
    %867 = vdwg.mxu0
    %868 = vmatprep.subr.mxu0 0.0
    %v869 = vand.u32 %v766, 4294901760
    %v870 = vsub.f32 %v766, %v869
    %v871 = vand.u32 %v870, 4294901760
    %v872 = vsub.f32 %v870, %v871
    %v873 = vand.u32 %v872, 4294901760
    %874 = vmatpush1.msra.mxu0 %v873
    %875 = vmatprep.subr.mxu0 0.0
    %v876 = vand.u32 %v765, 4294901760
    %v877 = vsub.f32 %v765, %v876
    %v878 = vand.u32 %v877, 4294901760
    %v879 = vsub.f32 %v877, %v878
    %v880 = vand.u32 %v879, 4294901760
    %881 = vmatpush1.msra.mxu0 %v880
    %882 = vmatprep.subr.mxu0 0.0
    %v883 = vand.u32 %v764, 4294901760
    %v884 = vsub.f32 %v764, %v883
    %v885 = vand.u32 %v884, 4294901760
    %v886 = vsub.f32 %v884, %v885
    %v887 = vand.u32 %v886, 4294901760
    %888 = vmatpush1.msra.mxu0 %v887
    %889 = vmatprep.subr.mxu0 0.0
    %v890 = vand.u32 %v763, 4294901760
    %v891 = vsub.f32 %v763, %v890
    %v892 = vand.u32 %v891, 4294901760
    %v893 = vsub.f32 %v891, %v892
    %v894 = vand.u32 %v893, 4294901760
    %895 = vmatpush1.msra.mxu0 %v894
    %896 = vmatprep.subr.mxu0 0.0
    %v897 = vand.u32 %v762, 4294901760
    %v898 = vsub.f32 %v762, %v897
    %v899 = vand.u32 %v898, 4294901760
    %v900 = vsub.f32 %v898, %v899
    %v901 = vand.u32 %v900, 4294901760
    %902 = vmatpush1.msra.mxu0 %v901
    %903 = vmatprep.subr.mxu0 0.0
    %v904 = vand.u32 %v761, 4294901760
    %v905 = vsub.f32 %v761, %v904
    %v906 = vand.u32 %v905, 4294901760
    %v907 = vsub.f32 %v905, %v906
    %v908 = vand.u32 %v907, 4294901760
    %909 = vmatpush1.msra.mxu0 %v908
    %910 = vmatprep.subr.mxu0 0.0
    %v911 = vand.u32 %v760, 4294901760
    %v912 = vsub.f32 %v760, %v911
    %v913 = vand.u32 %v912, 4294901760
    %v914 = vsub.f32 %v912, %v913
    %v915 = vand.u32 %v914, 4294901760
    %916 = vmatpush1.msra.mxu0 %v915
    %917 = vmatprep.subr.mxu0 0.0
    %v918 = vand.u32 %v759, 4294901760
    %v919 = vsub.f32 %v759, %v918
    %v920 = vand.u32 %v919, 4294901760
    %v921 = vsub.f32 %v919, %v920
    %v922 = vand.u32 %v921, 4294901760
    %923 = vmatpush1.msra.mxu0 %v922
    %924 = vmatprep.subr.mxu0 0.0
    %v925 = vand.u32 %v758, 4294901760
    %v926 = vsub.f32 %v758, %v925
    %v927 = vand.u32 %v926, 4294901760
    %v928 = vsub.f32 %v926, %v927
    %v929 = vand.u32 %v928, 4294901760
    %930 = vmatpush1.msra.mxu0 %v929
    %931 = vmatprep.subr.mxu0 0.0
    %v932 = vand.u32 %v757, 4294901760
    %v933 = vsub.f32 %v757, %v932
    %v934 = vand.u32 %v933, 4294901760
    %v935 = vsub.f32 %v933, %v934
    %v936 = vand.u32 %v935, 4294901760
    %937 = vmatpush1.msra.mxu0 %v936
    %938 = vmatprep.subr.mxu0 0.0
    %v939 = vand.u32 %v756, 4294901760
    %v940 = vsub.f32 %v756, %v939
    %v941 = vand.u32 %v940, 4294901760
    %v942 = vsub.f32 %v940, %v941
    %v943 = vand.u32 %v942, 4294901760
    %944 = vmatpush1.msra.mxu0 %v943
    %945 = vmatprep.subr.mxu0 0.0
    %v946 = vand.u32 %v755, 4294901760
    %v947 = vsub.f32 %v755, %v946
    %v948 = vand.u32 %v947, 4294901760
    %v949 = vsub.f32 %v947, %v948
    %v950 = vand.u32 %v949, 4294901760
    %951 = vmatpush1.msra.mxu0 %v950
    %952 = vmatprep.subr.mxu0 0.0
    %v953 = vand.u32 %v754, 4294901760
    %v954 = vsub.f32 %v754, %v953
    %v955 = vand.u32 %v954, 4294901760
    %v956 = vsub.f32 %v954, %v955
    %v957 = vand.u32 %v956, 4294901760
    %958 = vmatpush1.msra.mxu0 %v957
    %959 = vmatprep.subr.mxu0 0.0
    %v960 = vand.u32 %v753, 4294901760
    %v961 = vsub.f32 %v753, %v960
    %v962 = vand.u32 %v961, 4294901760
    %v963 = vsub.f32 %v961, %v962
    %v964 = vand.u32 %v963, 4294901760
    %965 = vmatpush1.msra.mxu0 %v964
    %966 = vmatprep.subr.mxu0 0.0
    %v967 = vand.u32 %v752, 4294901760
    %v968 = vsub.f32 %v752, %v967
    %v969 = vand.u32 %v968, 4294901760
    %v970 = vsub.f32 %v968, %v969
    %v971 = vand.u32 %v970, 4294901760
    %972 = vmatpush1.msra.mxu0 %v971
    %973 = vmatprep.subr.mxu0 0.0
    %v974 = vand.u32 %v751, 4294901760
    %v975 = vsub.f32 %v751, %v974
    %v976 = vand.u32 %v975, 4294901760
    %v977 = vsub.f32 %v975, %v976
    %v978 = vand.u32 %v977, 4294901760
    %979 = vmatpush1.msra.mxu0 %v978
    %980 = vmatprep.subr.mxu0 0.0
    %981 = vmatpush2.msra.mxu0 0.0
    %982 = vmatprep.subr.mxu0 0.0
    %983 = vmatpush2.msra.mxu0 0.0
    %984 = vmatprep.subr.mxu0 0.0
    %985 = vmatpush2.msra.mxu0 0.0
    %986 = vmatprep.subr.mxu0 0.0
    %987 = vmatpush2.msra.mxu0 0.0
    %988 = vmatprep.subr.mxu0 0.0
    %989 = vmatpush2.msra.mxu0 0.0
    %990 = vmatprep.subr.mxu0 0.0
    %991 = vmatpush2.msra.mxu0 0.0
    %992 = vmatprep.subr.mxu0 0.0
    %993 = vmatpush2.msra.mxu0 0.0
    %994 = vmatprep.subr.mxu0 0.0
    %995 = vmatpush2.msra.mxu0 0.0
    %996 = vmatprep.subr.mxu0 0.0
    %997 = vmatpush2.msra.mxu0 0.0
    %998 = vmatprep.subr.mxu0 0.0
    %999 = vmatpush2.msra.mxu0 0.0
    %1000 = vmatprep.subr.mxu0 0.0
    %1001 = vmatpush2.msra.mxu0 0.0
    %1002 = vmatprep.subr.mxu0 0.0
    %1003 = vmatpush2.msra.mxu0 0.0
    %1004 = vmatprep.subr.mxu0 0.0
    %1005 = vmatpush2.msra.mxu0 0.0
    %1006 = vmatprep.subr.mxu0 0.0
    %1007 = vmatpush2.msra.mxu0 0.0
    %1008 = vmatprep.subr.mxu0 0.0
    %1009 = vmatpush2.msra.mxu0 0.0
    %1010 = vmatprep.subr.mxu0 0.0
    %1011 = vmatpush2.msra.mxu0 0.0
    %1012 = vmatprep.mubr.f32.mxu0 0.0
    %v1013 = vand.u32 %v749, 4294901760
    %1014 = vmatmul.mubr.f32.gmra.mxu0 %v1013
    %v1015 = vpop.f32.mrf.mxu0
    %v1016 = vadd.f32 %v855, %v1015
    %v1017 = vpop.f32.mrf.mxu0
    %1018 = vmatprep.mubr.f32.mxu0 0.0
    %v1019 = vand.u32 %v750, 4294901760
    %1020 = vmatmul.mubr.f32.gmra.mxu0 %v1019
    %v1021 = vpop.f32.mrf.mxu0
    %v1022 = vadd.f32 %v865, %v1021
    %v1023 = vpop.f32.mrf.mxu0
    %1024 = vdwg.mxu0
    %1025 = vmatprep.subr.mxu0 0.0
    %v1026 = vand.u32 %v766, 4294901760
    %v1027 = vsub.f32 %v766, %v1026
    %1028 = vmatpush1.msra.mxu0 %v1027
    %1029 = vmatprep.subr.mxu0 0.0
    %v1030 = vand.u32 %v765, 4294901760
    %v1031 = vsub.f32 %v765, %v1030
    %1032 = vmatpush1.msra.mxu0 %v1031
    %1033 = vmatprep.subr.mxu0 0.0
    %v1034 = vand.u32 %v764, 4294901760
    %v1035 = vsub.f32 %v764, %v1034
    %1036 = vmatpush1.msra.mxu0 %v1035
    %1037 = vmatprep.subr.mxu0 0.0
    %v1038 = vand.u32 %v763, 4294901760
    %v1039 = vsub.f32 %v763, %v1038
    %1040 = vmatpush1.msra.mxu0 %v1039
    %1041 = vmatprep.subr.mxu0 0.0
    %v1042 = vand.u32 %v762, 4294901760
    %v1043 = vsub.f32 %v762, %v1042
    %1044 = vmatpush1.msra.mxu0 %v1043
    %1045 = vmatprep.subr.mxu0 0.0
    %v1046 = vand.u32 %v761, 4294901760
    %v1047 = vsub.f32 %v761, %v1046
    %1048 = vmatpush1.msra.mxu0 %v1047
    %1049 = vmatprep.subr.mxu0 0.0
    %v1050 = vand.u32 %v760, 4294901760
    %v1051 = vsub.f32 %v760, %v1050
    %1052 = vmatpush1.msra.mxu0 %v1051
    %1053 = vmatprep.subr.mxu0 0.0
    %v1054 = vand.u32 %v759, 4294901760
    %v1055 = vsub.f32 %v759, %v1054
    %1056 = vmatpush1.msra.mxu0 %v1055
    %1057 = vmatprep.subr.mxu0 0.0
    %v1058 = vand.u32 %v758, 4294901760
    %v1059 = vsub.f32 %v758, %v1058
    %1060 = vmatpush1.msra.mxu0 %v1059
    %1061 = vmatprep.subr.mxu0 0.0
    %v1062 = vand.u32 %v757, 4294901760
    %v1063 = vsub.f32 %v757, %v1062
    %1064 = vmatpush1.msra.mxu0 %v1063
    %1065 = vmatprep.subr.mxu0 0.0
    %v1066 = vand.u32 %v756, 4294901760
    %v1067 = vsub.f32 %v756, %v1066
    %1068 = vmatpush1.msra.mxu0 %v1067
    %1069 = vmatprep.subr.mxu0 0.0
    %v1070 = vand.u32 %v755, 4294901760
    %v1071 = vsub.f32 %v755, %v1070
    %1072 = vmatpush1.msra.mxu0 %v1071
    %1073 = vmatprep.subr.mxu0 0.0
    %v1074 = vand.u32 %v754, 4294901760
    %v1075 = vsub.f32 %v754, %v1074
    %1076 = vmatpush1.msra.mxu0 %v1075
    %1077 = vmatprep.subr.mxu0 0.0
    %v1078 = vand.u32 %v753, 4294901760
    %v1079 = vsub.f32 %v753, %v1078
    %1080 = vmatpush1.msra.mxu0 %v1079
    %1081 = vmatprep.subr.mxu0 0.0
    %v1082 = vand.u32 %v752, 4294901760
    %v1083 = vsub.f32 %v752, %v1082
    %1084 = vmatpush1.msra.mxu0 %v1083
    %1085 = vmatprep.subr.mxu0 0.0
    %v1086 = vand.u32 %v751, 4294901760
    %v1087 = vsub.f32 %v751, %v1086
    %1088 = vmatpush1.msra.mxu0 %v1087
    %1089 = vmatprep.subr.mxu0 0.0
    %1090 = vmatpush2.msra.mxu0 0.0
    %1091 = vmatprep.subr.mxu0 0.0
    %1092 = vmatpush2.msra.mxu0 0.0
    %1093 = vmatprep.subr.mxu0 0.0
    %1094 = vmatpush2.msra.mxu0 0.0
    %1095 = vmatprep.subr.mxu0 0.0
    %1096 = vmatpush2.msra.mxu0 0.0
    %1097 = vmatprep.subr.mxu0 0.0
    %1098 = vmatpush2.msra.mxu0 0.0
    %1099 = vmatprep.subr.mxu0 0.0
    %1100 = vmatpush2.msra.mxu0 0.0
    %1101 = vmatprep.subr.mxu0 0.0
    %1102 = vmatpush2.msra.mxu0 0.0
    %1103 = vmatprep.subr.mxu0 0.0
    %1104 = vmatpush2.msra.mxu0 0.0
    %1105 = vmatprep.subr.mxu0 0.0
    %1106 = vmatpush2.msra.mxu0 0.0
    %1107 = vmatprep.subr.mxu0 0.0
    %1108 = vmatpush2.msra.mxu0 0.0
    %1109 = vmatprep.subr.mxu0 0.0
    %1110 = vmatpush2.msra.mxu0 0.0
    %1111 = vmatprep.subr.mxu0 0.0
    %1112 = vmatpush2.msra.mxu0 0.0
    %1113 = vmatprep.subr.mxu0 0.0
    %1114 = vmatpush2.msra.mxu0 0.0
    %1115 = vmatprep.subr.mxu0 0.0
    %1116 = vmatpush2.msra.mxu0 0.0
    %1117 = vmatprep.subr.mxu0 0.0
    %1118 = vmatpush2.msra.mxu0 0.0
    %1119 = vmatprep.subr.mxu0 0.0
    %1120 = vmatpush2.msra.mxu0 0.0
    %1121 = vmatprep.mubr.f32.mxu0 0.0
    %v1122 = vand.u32 %v749, 4294901760
    %v1123 = vsub.f32 %v749, %v1122
    %1124 = vmatmul.mubr.f32.gmra.mxu0 %v1123
    %v1125 = vpop.f32.mrf.mxu0
    %v1126 = vadd.f32 %v1016, %v1125
    %v1127 = vpop.f32.mrf.mxu0
    %1128 = vmatprep.mubr.f32.mxu0 0.0
    %v1129 = vand.u32 %v750, 4294901760
    %v1130 = vsub.f32 %v750, %v1129
    %1131 = vmatmul.mubr.f32.gmra.mxu0 %v1130
    %v1132 = vpop.f32.mrf.mxu0
    %v1133 = vadd.f32 %v1022, %v1132
    %v1134 = vpop.f32.mrf.mxu0
    %1135 = vdwg.mxu0
    %1136 = vmatprep.subr.mxu0 0.0
    %v1137 = vand.u32 %v766, 4294901760
    %1138 = vmatpush1.msra.mxu0 %v1137
    %1139 = vmatprep.subr.mxu0 0.0
    %v1140 = vand.u32 %v765, 4294901760
    %1141 = vmatpush1.msra.mxu0 %v1140
    %1142 = vmatprep.subr.mxu0 0.0
    %v1143 = vand.u32 %v764, 4294901760
    %1144 = vmatpush1.msra.mxu0 %v1143
    %1145 = vmatprep.subr.mxu0 0.0
    %v1146 = vand.u32 %v763, 4294901760
    %1147 = vmatpush1.msra.mxu0 %v1146
    %1148 = vmatprep.subr.mxu0 0.0
    %v1149 = vand.u32 %v762, 4294901760
    %1150 = vmatpush1.msra.mxu0 %v1149
    %1151 = vmatprep.subr.mxu0 0.0
    %v1152 = vand.u32 %v761, 4294901760
    %1153 = vmatpush1.msra.mxu0 %v1152
    %1154 = vmatprep.subr.mxu0 0.0
    %v1155 = vand.u32 %v760, 4294901760
    %1156 = vmatpush1.msra.mxu0 %v1155
    %1157 = vmatprep.subr.mxu0 0.0
    %v1158 = vand.u32 %v759, 4294901760
    %1159 = vmatpush1.msra.mxu0 %v1158
    %1160 = vmatprep.subr.mxu0 0.0
    %v1161 = vand.u32 %v758, 4294901760
    %1162 = vmatpush1.msra.mxu0 %v1161
    %1163 = vmatprep.subr.mxu0 0.0
    %v1164 = vand.u32 %v757, 4294901760
    %1165 = vmatpush1.msra.mxu0 %v1164
    %1166 = vmatprep.subr.mxu0 0.0
    %v1167 = vand.u32 %v756, 4294901760
    %1168 = vmatpush1.msra.mxu0 %v1167
    %1169 = vmatprep.subr.mxu0 0.0
    %v1170 = vand.u32 %v755, 4294901760
    %1171 = vmatpush1.msra.mxu0 %v1170
    %1172 = vmatprep.subr.mxu0 0.0
    %v1173 = vand.u32 %v754, 4294901760
    %1174 = vmatpush1.msra.mxu0 %v1173
    %1175 = vmatprep.subr.mxu0 0.0
    %v1176 = vand.u32 %v753, 4294901760
    %1177 = vmatpush1.msra.mxu0 %v1176
    %1178 = vmatprep.subr.mxu0 0.0
    %v1179 = vand.u32 %v752, 4294901760
    %1180 = vmatpush1.msra.mxu0 %v1179
    %1181 = vmatprep.subr.mxu0 0.0
    %v1182 = vand.u32 %v751, 4294901760
    %1183 = vmatpush1.msra.mxu0 %v1182
    %1184 = vmatprep.subr.mxu0 0.0
    %1185 = vmatpush2.msra.mxu0 0.0
    %1186 = vmatprep.subr.mxu0 0.0
    %1187 = vmatpush2.msra.mxu0 0.0
    %1188 = vmatprep.subr.mxu0 0.0
    %1189 = vmatpush2.msra.mxu0 0.0
    %1190 = vmatprep.subr.mxu0 0.0
    %1191 = vmatpush2.msra.mxu0 0.0
    %1192 = vmatprep.subr.mxu0 0.0
    %1193 = vmatpush2.msra.mxu0 0.0
    %1194 = vmatprep.subr.mxu0 0.0
    %1195 = vmatpush2.msra.mxu0 0.0
    %1196 = vmatprep.subr.mxu0 0.0
    %1197 = vmatpush2.msra.mxu0 0.0
    %1198 = vmatprep.subr.mxu0 0.0
    %1199 = vmatpush2.msra.mxu0 0.0
    %1200 = vmatprep.subr.mxu0 0.0
    %1201 = vmatpush2.msra.mxu0 0.0
    %1202 = vmatprep.subr.mxu0 0.0
    %1203 = vmatpush2.msra.mxu0 0.0
    %1204 = vmatprep.subr.mxu0 0.0
    %1205 = vmatpush2.msra.mxu0 0.0
    %1206 = vmatprep.subr.mxu0 0.0
    %1207 = vmatpush2.msra.mxu0 0.0
    %1208 = vmatprep.subr.mxu0 0.0
    %1209 = vmatpush2.msra.mxu0 0.0
    %1210 = vmatprep.subr.mxu0 0.0
    %1211 = vmatpush2.msra.mxu0 0.0
    %1212 = vmatprep.subr.mxu0 0.0
    %1213 = vmatpush2.msra.mxu0 0.0
    %1214 = vmatprep.subr.mxu0 0.0
    %1215 = vmatpush2.msra.mxu0 0.0
    %1216 = vmatprep.mubr.f32.mxu0 0.0
    %v1217 = vand.u32 %v749, 4294901760
    %v1218 = vsub.f32 %v749, %v1217
    %v1219 = vand.u32 %v1218, 4294901760
    %1220 = vmatmul.mubr.f32.gmra.mxu0 %v1219
    %v1221 = vpop.f32.mrf.mxu0
    %v1222 = vadd.f32 %v1126, %v1221
    %v1223 = vpop.f32.mrf.mxu0
    %1224 = vmatprep.mubr.f32.mxu0 0.0
    %v1225 = vand.u32 %v750, 4294901760
    %v1226 = vsub.f32 %v750, %v1225
    %v1227 = vand.u32 %v1226, 4294901760
    %1228 = vmatmul.mubr.f32.gmra.mxu0 %v1227
    %v1229 = vpop.f32.mrf.mxu0
    %v1230 = vadd.f32 %v1133, %v1229
    %v1231 = vpop.f32.mrf.mxu0
    %1232 = vdwg.mxu0
    %1233 = vmatprep.subr.mxu0 0.0
    %v1234 = vand.u32 %v766, 4294901760
    %v1235 = vsub.f32 %v766, %v1234
    %v1236 = vand.u32 %v1235, 4294901760
    %1237 = vmatpush1.msra.mxu0 %v1236
    %1238 = vmatprep.subr.mxu0 0.0
    %v1239 = vand.u32 %v765, 4294901760
    %v1240 = vsub.f32 %v765, %v1239
    %v1241 = vand.u32 %v1240, 4294901760
    %1242 = vmatpush1.msra.mxu0 %v1241
    %1243 = vmatprep.subr.mxu0 0.0
    %v1244 = vand.u32 %v764, 4294901760
    %v1245 = vsub.f32 %v764, %v1244
    %v1246 = vand.u32 %v1245, 4294901760
    %1247 = vmatpush1.msra.mxu0 %v1246
    %1248 = vmatprep.subr.mxu0 0.0
    %v1249 = vand.u32 %v763, 4294901760
    %v1250 = vsub.f32 %v763, %v1249
    %v1251 = vand.u32 %v1250, 4294901760
    %1252 = vmatpush1.msra.mxu0 %v1251
    %1253 = vmatprep.subr.mxu0 0.0
    %v1254 = vand.u32 %v762, 4294901760
    %v1255 = vsub.f32 %v762, %v1254
    %v1256 = vand.u32 %v1255, 4294901760
    %1257 = vmatpush1.msra.mxu0 %v1256
    %1258 = vmatprep.subr.mxu0 0.0
    %v1259 = vand.u32 %v761, 4294901760
    %v1260 = vsub.f32 %v761, %v1259
    %v1261 = vand.u32 %v1260, 4294901760
    %1262 = vmatpush1.msra.mxu0 %v1261
    %1263 = vmatprep.subr.mxu0 0.0
    %v1264 = vand.u32 %v760, 4294901760
    %v1265 = vsub.f32 %v760, %v1264
    %v1266 = vand.u32 %v1265, 4294901760
    %1267 = vmatpush1.msra.mxu0 %v1266
    %1268 = vmatprep.subr.mxu0 0.0
    %v1269 = vand.u32 %v759, 4294901760
    %v1270 = vsub.f32 %v759, %v1269
    %v1271 = vand.u32 %v1270, 4294901760
    %1272 = vmatpush1.msra.mxu0 %v1271
    %1273 = vmatprep.subr.mxu0 0.0
    %v1274 = vand.u32 %v758, 4294901760
    %v1275 = vsub.f32 %v758, %v1274
    %v1276 = vand.u32 %v1275, 4294901760
    %1277 = vmatpush1.msra.mxu0 %v1276
    %1278 = vmatprep.subr.mxu0 0.0
    %v1279 = vand.u32 %v757, 4294901760
    %v1280 = vsub.f32 %v757, %v1279
    %v1281 = vand.u32 %v1280, 4294901760
    %1282 = vmatpush1.msra.mxu0 %v1281
    %1283 = vmatprep.subr.mxu0 0.0
    %v1284 = vand.u32 %v756, 4294901760
    %v1285 = vsub.f32 %v756, %v1284
    %v1286 = vand.u32 %v1285, 4294901760
    %1287 = vmatpush1.msra.mxu0 %v1286
    %1288 = vmatprep.subr.mxu0 0.0
    %v1289 = vand.u32 %v755, 4294901760
    %v1290 = vsub.f32 %v755, %v1289
    %v1291 = vand.u32 %v1290, 4294901760
    %1292 = vmatpush1.msra.mxu0 %v1291
    %1293 = vmatprep.subr.mxu0 0.0
    %v1294 = vand.u32 %v754, 4294901760
    %v1295 = vsub.f32 %v754, %v1294
    %v1296 = vand.u32 %v1295, 4294901760
    %1297 = vmatpush1.msra.mxu0 %v1296
    %1298 = vmatprep.subr.mxu0 0.0
    %v1299 = vand.u32 %v753, 4294901760
    %v1300 = vsub.f32 %v753, %v1299
    %v1301 = vand.u32 %v1300, 4294901760
    %1302 = vmatpush1.msra.mxu0 %v1301
    %1303 = vmatprep.subr.mxu0 0.0
    %v1304 = vand.u32 %v752, 4294901760
    %v1305 = vsub.f32 %v752, %v1304
    %v1306 = vand.u32 %v1305, 4294901760
    %1307 = vmatpush1.msra.mxu0 %v1306
    %1308 = vmatprep.subr.mxu0 0.0
    %v1309 = vand.u32 %v751, 4294901760
    %v1310 = vsub.f32 %v751, %v1309
    %v1311 = vand.u32 %v1310, 4294901760
    %1312 = vmatpush1.msra.mxu0 %v1311
    %1313 = vmatprep.subr.mxu0 0.0
    %1314 = vmatpush2.msra.mxu0 0.0
    %1315 = vmatprep.subr.mxu0 0.0
    %1316 = vmatpush2.msra.mxu0 0.0
    %1317 = vmatprep.subr.mxu0 0.0
    %1318 = vmatpush2.msra.mxu0 0.0
    %1319 = vmatprep.subr.mxu0 0.0
    %1320 = vmatpush2.msra.mxu0 0.0
    %1321 = vmatprep.subr.mxu0 0.0
    %1322 = vmatpush2.msra.mxu0 0.0
    %1323 = vmatprep.subr.mxu0 0.0
    %1324 = vmatpush2.msra.mxu0 0.0
    %1325 = vmatprep.subr.mxu0 0.0
    %1326 = vmatpush2.msra.mxu0 0.0
    %1327 = vmatprep.subr.mxu0 0.0
    %1328 = vmatpush2.msra.mxu0 0.0
    %1329 = vmatprep.subr.mxu0 0.0
    %1330 = vmatpush2.msra.mxu0 0.0
    %1331 = vmatprep.subr.mxu0 0.0
    %1332 = vmatpush2.msra.mxu0 0.0
    %1333 = vmatprep.subr.mxu0 0.0
    %1334 = vmatpush2.msra.mxu0 0.0
    %1335 = vmatprep.subr.mxu0 0.0
    %1336 = vmatpush2.msra.mxu0 0.0
    %1337 = vmatprep.subr.mxu0 0.0
    %1338 = vmatpush2.msra.mxu0 0.0
    %1339 = vmatprep.subr.mxu0 0.0
    %1340 = vmatpush2.msra.mxu0 0.0
    %1341 = vmatprep.subr.mxu0 0.0
    %1342 = vmatpush2.msra.mxu0 0.0
    %1343 = vmatprep.subr.mxu0 0.0
    %1344 = vmatpush2.msra.mxu0 0.0
    %1345 = vmatprep.mubr.f32.mxu0 0.0
    %v1346 = vand.u32 %v749, 4294901760
    %1347 = vmatmul.mubr.f32.gmra.mxu0 %v1346
    %v1348 = vpop.f32.mrf.mxu0
    %v1349 = vadd.f32 %v1222, %v1348
    %v1350 = vpop.f32.mrf.mxu0
    %1351 = vmatprep.mubr.f32.mxu0 0.0
    %v1352 = vand.u32 %v750, 4294901760
    %1353 = vmatmul.mubr.f32.gmra.mxu0 %v1352
    %v1354 = vpop.f32.mrf.mxu0
    %v1355 = vadd.f32 %v1230, %v1354
    %v1356 = vpop.f32.mrf.mxu0
    %1357 = vdwg.mxu0
    %1358 = vmatprep.subr.mxu0 0.0
    %v1359 = vand.u32 %v766, 4294901760
    %1360 = vmatpush1.msra.mxu0 %v1359
    %1361 = vmatprep.subr.mxu0 0.0
    %v1362 = vand.u32 %v765, 4294901760
    %1363 = vmatpush1.msra.mxu0 %v1362
    %1364 = vmatprep.subr.mxu0 0.0
    %v1365 = vand.u32 %v764, 4294901760
    %1366 = vmatpush1.msra.mxu0 %v1365
    %1367 = vmatprep.subr.mxu0 0.0
    %v1368 = vand.u32 %v763, 4294901760
    %1369 = vmatpush1.msra.mxu0 %v1368
    %1370 = vmatprep.subr.mxu0 0.0
    %v1371 = vand.u32 %v762, 4294901760
    %1372 = vmatpush1.msra.mxu0 %v1371
    %1373 = vmatprep.subr.mxu0 0.0
    %v1374 = vand.u32 %v761, 4294901760
    %1375 = vmatpush1.msra.mxu0 %v1374
    %1376 = vmatprep.subr.mxu0 0.0
    %v1377 = vand.u32 %v760, 4294901760
    %1378 = vmatpush1.msra.mxu0 %v1377
    %1379 = vmatprep.subr.mxu0 0.0
    %v1380 = vand.u32 %v759, 4294901760
    %1381 = vmatpush1.msra.mxu0 %v1380
    %1382 = vmatprep.subr.mxu0 0.0
    %v1383 = vand.u32 %v758, 4294901760
    %1384 = vmatpush1.msra.mxu0 %v1383
    %1385 = vmatprep.subr.mxu0 0.0
    %v1386 = vand.u32 %v757, 4294901760
    %1387 = vmatpush1.msra.mxu0 %v1386
    %1388 = vmatprep.subr.mxu0 0.0
    %v1389 = vand.u32 %v756, 4294901760
    %1390 = vmatpush1.msra.mxu0 %v1389
    %1391 = vmatprep.subr.mxu0 0.0
    %v1392 = vand.u32 %v755, 4294901760
    %1393 = vmatpush1.msra.mxu0 %v1392
    %1394 = vmatprep.subr.mxu0 0.0
    %v1395 = vand.u32 %v754, 4294901760
    %1396 = vmatpush1.msra.mxu0 %v1395
    %1397 = vmatprep.subr.mxu0 0.0
    %v1398 = vand.u32 %v753, 4294901760
    %1399 = vmatpush1.msra.mxu0 %v1398
    %1400 = vmatprep.subr.mxu0 0.0
    %v1401 = vand.u32 %v752, 4294901760
    %1402 = vmatpush1.msra.mxu0 %v1401
    %1403 = vmatprep.subr.mxu0 0.0
    %v1404 = vand.u32 %v751, 4294901760
    %1405 = vmatpush1.msra.mxu0 %v1404
    %1406 = vmatprep.subr.mxu0 0.0
    %1407 = vmatpush2.msra.mxu0 0.0
    %1408 = vmatprep.subr.mxu0 0.0
    %1409 = vmatpush2.msra.mxu0 0.0
    %1410 = vmatprep.subr.mxu0 0.0
    %1411 = vmatpush2.msra.mxu0 0.0
    %1412 = vmatprep.subr.mxu0 0.0
    %1413 = vmatpush2.msra.mxu0 0.0
    %1414 = vmatprep.subr.mxu0 0.0
    %1415 = vmatpush2.msra.mxu0 0.0
    %1416 = vmatprep.subr.mxu0 0.0
    %1417 = vmatpush2.msra.mxu0 0.0
    %1418 = vmatprep.subr.mxu0 0.0
    %1419 = vmatpush2.msra.mxu0 0.0
    %1420 = vmatprep.subr.mxu0 0.0
    %1421 = vmatpush2.msra.mxu0 0.0
    %1422 = vmatprep.subr.mxu0 0.0
    %1423 = vmatpush2.msra.mxu0 0.0
    %1424 = vmatprep.subr.mxu0 0.0
    %1425 = vmatpush2.msra.mxu0 0.0
    %1426 = vmatprep.subr.mxu0 0.0
    %1427 = vmatpush2.msra.mxu0 0.0
    %1428 = vmatprep.subr.mxu0 0.0
    %1429 = vmatpush2.msra.mxu0 0.0
    %1430 = vmatprep.subr.mxu0 0.0
    %1431 = vmatpush2.msra.mxu0 0.0
    %1432 = vmatprep.subr.mxu0 0.0
    %1433 = vmatpush2.msra.mxu0 0.0
    %1434 = vmatprep.subr.mxu0 0.0
    %1435 = vmatpush2.msra.mxu0 0.0
    %1436 = vmatprep.subr.mxu0 0.0
    %1437 = vmatpush2.msra.mxu0 0.0
    %1438 = vmatprep.mubr.f32.mxu0 0.0
    %v1439 = vand.u32 %v749, 4294901760
    %1440 = vmatmul.mubr.f32.gmra.mxu0 %v1439
    %v1441 = vpop.f32.mrf.mxu0
    %v1442 = vadd.f32 %v1349, %v1441
    %v1443 = vpop.f32.mrf.mxu0
    %1444 = vmatprep.mubr.f32.mxu0 0.0
    %v1445 = vand.u32 %v750, 4294901760
    %1446 = vmatmul.mubr.f32.gmra.mxu0 %v1445
    %v1447 = vpop.f32.mrf.mxu0
    %v1448 = vadd.f32 %v1355, %v1447
    %v1449 = vpop.f32.mrf.mxu0
    %1450 = vdwg.mxu0
    %1453 = vrot.lane.b32.xlu0 %v1442, 64
    %v1454 = vpop.permute.xlu0 %1453
    %1455 = vrot.lane.b32.xlu0 %v1448, 64
    %v1456 = vpop.permute.xlu0 %1455
    %vm1459 = vcmask 785920
    %1460 = vst.msk [vmem:[#allocation2] sm:$0xff] %vm1459, %v1454
    %1461 = vst.msk [vmem:[#allocation2 + $0x8] sm:$0xff] %vm1459, %v1456
    %1462 = vset.pattern.permute.xlu0 2
    %1463 = vperm.xlu0 %1462, %v20
    %v1464 = vpop.permute.xlu0 %1463
    %1465 = vset.pattern.permute.xlu0 2
    %1466 = vperm.xlu0 %1465, %v21
    %v1467 = vpop.permute.xlu0 %1466
    %vm1468 = vcmp.eq.s32.totalorder %v1464, %v23
    %vm1469 = vcmp.eq.s32.totalorder %v1467, %v23
    %v1470 = vsel %vm1468, 1, 0
    %v1471 = vsel %vm1469, 1, 0
    %v1472 = vcvt.s32.f32 %v1470
    %v1473 = vcvt.s32.f32 %v1471
    %v1474 = vld [vmem:[%s3] sm:$0xff]
    %v1475 = vld [vmem:[%s3 + $0x8] sm:$0xff]
    %v1476 = vld [vmem:[%s3 + $0x10] sm:$0xff]
    %v1477 = vld [vmem:[%s3 + $0x18] sm:$0xff]
    %v1478 = vld [vmem:[%s3 + $0x20] sm:$0xff]
    %v1479 = vld [vmem:[%s3 + $0x28] sm:$0xff]
    %v1480 = vld [vmem:[%s3 + $0x30] sm:$0xff]
    %v1481 = vld [vmem:[%s3 + $0x38] sm:$0xff]
    %v1482 = vld [vmem:[%s3 + $0x40] sm:$0xff]
    %v1483 = vld [vmem:[%s3 + $0x48] sm:$0xff]
    %v1484 = vld [vmem:[%s3 + $0x50] sm:$0xff]
    %v1485 = vld [vmem:[%s3 + $0x58] sm:$0xff]
    %v1486 = vld [vmem:[%s3 + $0x60] sm:$0xff]
    %v1487 = vld [vmem:[%s3 + $0x68] sm:$0xff]
    %v1488 = vld [vmem:[%s3 + $0x70] sm:$0xff]
    %v1489 = vld [vmem:[%s3 + $0x78] sm:$0xff]
    %1490 = vmatprep.subr.mxu0 0.0
    %v1491 = vand.u32 %v1489, 4294901760
    %1492 = vmatpush1.msra.mxu0 %v1491
    %1493 = vmatprep.subr.mxu0 0.0
    %v1494 = vand.u32 %v1488, 4294901760
    %1495 = vmatpush1.msra.mxu0 %v1494
    %1496 = vmatprep.subr.mxu0 0.0
    %v1497 = vand.u32 %v1487, 4294901760
    %1498 = vmatpush1.msra.mxu0 %v1497
    %1499 = vmatprep.subr.mxu0 0.0
    %v1500 = vand.u32 %v1486, 4294901760
    %1501 = vmatpush1.msra.mxu0 %v1500
    %1502 = vmatprep.subr.mxu0 0.0
    %v1503 = vand.u32 %v1485, 4294901760
    %1504 = vmatpush1.msra.mxu0 %v1503
    %1505 = vmatprep.subr.mxu0 0.0
    %v1506 = vand.u32 %v1484, 4294901760
    %1507 = vmatpush1.msra.mxu0 %v1506
    %1508 = vmatprep.subr.mxu0 0.0
    %v1509 = vand.u32 %v1483, 4294901760
    %1510 = vmatpush1.msra.mxu0 %v1509
    %1511 = vmatprep.subr.mxu0 0.0
    %v1512 = vand.u32 %v1482, 4294901760
    %1513 = vmatpush1.msra.mxu0 %v1512
    %1514 = vmatprep.subr.mxu0 0.0
    %v1515 = vand.u32 %v1481, 4294901760
    %1516 = vmatpush1.msra.mxu0 %v1515
    %1517 = vmatprep.subr.mxu0 0.0
    %v1518 = vand.u32 %v1480, 4294901760
    %1519 = vmatpush1.msra.mxu0 %v1518
    %1520 = vmatprep.subr.mxu0 0.0
    %v1521 = vand.u32 %v1479, 4294901760
    %1522 = vmatpush1.msra.mxu0 %v1521
    %1523 = vmatprep.subr.mxu0 0.0
    %v1524 = vand.u32 %v1478, 4294901760
    %1525 = vmatpush1.msra.mxu0 %v1524
    %1526 = vmatprep.subr.mxu0 0.0
    %v1527 = vand.u32 %v1477, 4294901760
    %1528 = vmatpush1.msra.mxu0 %v1527
    %1529 = vmatprep.subr.mxu0 0.0
    %v1530 = vand.u32 %v1476, 4294901760
    %1531 = vmatpush1.msra.mxu0 %v1530
    %1532 = vmatprep.subr.mxu0 0.0
    %v1533 = vand.u32 %v1475, 4294901760
    %1534 = vmatpush1.msra.mxu0 %v1533
    %1535 = vmatprep.subr.mxu0 0.0
    %v1536 = vand.u32 %v1474, 4294901760
    %1537 = vmatpush1.msra.mxu0 %v1536
    %1538 = vmatprep.subr.mxu0 0.0
    %1539 = vmatpush2.msra.mxu0 0.0
    %1540 = vmatprep.subr.mxu0 0.0
    %1541 = vmatpush2.msra.mxu0 0.0
    %1542 = vmatprep.subr.mxu0 0.0
    %1543 = vmatpush2.msra.mxu0 0.0
    %1544 = vmatprep.subr.mxu0 0.0
    %1545 = vmatpush2.msra.mxu0 0.0
    %1546 = vmatprep.subr.mxu0 0.0
    %1547 = vmatpush2.msra.mxu0 0.0
    %1548 = vmatprep.subr.mxu0 0.0
    %1549 = vmatpush2.msra.mxu0 0.0
    %1550 = vmatprep.subr.mxu0 0.0
    %1551 = vmatpush2.msra.mxu0 0.0
    %1552 = vmatprep.subr.mxu0 0.0
    %1553 = vmatpush2.msra.mxu0 0.0
    %1554 = vmatprep.subr.mxu0 0.0
    %1555 = vmatpush2.msra.mxu0 0.0
    %1556 = vmatprep.subr.mxu0 0.0
    %1557 = vmatpush2.msra.mxu0 0.0
    %1558 = vmatprep.subr.mxu0 0.0
    %1559 = vmatpush2.msra.mxu0 0.0
    %1560 = vmatprep.subr.mxu0 0.0
    %1561 = vmatpush2.msra.mxu0 0.0
    %1562 = vmatprep.subr.mxu0 0.0
    %1563 = vmatpush2.msra.mxu0 0.0
    %1564 = vmatprep.subr.mxu0 0.0
    %1565 = vmatpush2.msra.mxu0 0.0
    %1566 = vmatprep.subr.mxu0 0.0
    %1567 = vmatpush2.msra.mxu0 0.0
    %1568 = vmatprep.subr.mxu0 0.0
    %1569 = vmatpush2.msra.mxu0 0.0
    %1570 = vmatprep.mubr.f32.mxu0 0.0
    %v1571 = vand.u32 %v1472, 4294901760
    %v1572 = vsub.f32 %v1472, %v1571
    %v1573 = vand.u32 %v1572, 4294901760
    %v1574 = vsub.f32 %v1572, %v1573
    %v1575 = vand.u32 %v1574, 4294901760
    %1576 = vmatmul.mubr.f32.gmra.mxu0 %v1575
    %v1577 = vpop.f32.mrf.mxu0
    %v1578 = vadd.f32 0.0, %v1577
    %v1579 = vpop.f32.mrf.mxu0
    %1580 = vmatprep.mubr.f32.mxu0 0.0
    %v1581 = vand.u32 %v1473, 4294901760
    %v1582 = vsub.f32 %v1473, %v1581
    %v1583 = vand.u32 %v1582, 4294901760
    %v1584 = vsub.f32 %v1582, %v1583
    %v1585 = vand.u32 %v1584, 4294901760
    %1586 = vmatmul.mubr.f32.gmra.mxu0 %v1585
    %v1587 = vpop.f32.mrf.mxu0
    %v1588 = vadd.f32 0.0, %v1587
    %v1589 = vpop.f32.mrf.mxu0
    %1590 = vdwg.mxu0
    %1591 = vmatprep.subr.mxu0 0.0
    %v1592 = vand.u32 %v1489, 4294901760
    %v1593 = vsub.f32 %v1489, %v1592
    %v1594 = vand.u32 %v1593, 4294901760
    %v1595 = vsub.f32 %v1593, %v1594
    %v1596 = vand.u32 %v1595, 4294901760
    %1597 = vmatpush1.msra.mxu0 %v1596
    %1598 = vmatprep.subr.mxu0 0.0
    %v1599 = vand.u32 %v1488, 4294901760
    %v1600 = vsub.f32 %v1488, %v1599
    %v1601 = vand.u32 %v1600, 4294901760
    %v1602 = vsub.f32 %v1600, %v1601
    %v1603 = vand.u32 %v1602, 4294901760
    %1604 = vmatpush1.msra.mxu0 %v1603
    %1605 = vmatprep.subr.mxu0 0.0
    %v1606 = vand.u32 %v1487, 4294901760
    %v1607 = vsub.f32 %v1487, %v1606
    %v1608 = vand.u32 %v1607, 4294901760
    %v1609 = vsub.f32 %v1607, %v1608
    %v1610 = vand.u32 %v1609, 4294901760
    %1611 = vmatpush1.msra.mxu0 %v1610
    %1612 = vmatprep.subr.mxu0 0.0
    %v1613 = vand.u32 %v1486, 4294901760
    %v1614 = vsub.f32 %v1486, %v1613
    %v1615 = vand.u32 %v1614, 4294901760
    %v1616 = vsub.f32 %v1614, %v1615
    %v1617 = vand.u32 %v1616, 4294901760
    %1618 = vmatpush1.msra.mxu0 %v1617
    %1619 = vmatprep.subr.mxu0 0.0
    %v1620 = vand.u32 %v1485, 4294901760
    %v1621 = vsub.f32 %v1485, %v1620
    %v1622 = vand.u32 %v1621, 4294901760
    %v1623 = vsub.f32 %v1621, %v1622
    %v1624 = vand.u32 %v1623, 4294901760
    %1625 = vmatpush1.msra.mxu0 %v1624
    %1626 = vmatprep.subr.mxu0 0.0
    %v1627 = vand.u32 %v1484, 4294901760
    %v1628 = vsub.f32 %v1484, %v1627
    %v1629 = vand.u32 %v1628, 4294901760
    %v1630 = vsub.f32 %v1628, %v1629
    %v1631 = vand.u32 %v1630, 4294901760
    %1632 = vmatpush1.msra.mxu0 %v1631
    %1633 = vmatprep.subr.mxu0 0.0
    %v1634 = vand.u32 %v1483, 4294901760
    %v1635 = vsub.f32 %v1483, %v1634
    %v1636 = vand.u32 %v1635, 4294901760
    %v1637 = vsub.f32 %v1635, %v1636
    %v1638 = vand.u32 %v1637, 4294901760
    %1639 = vmatpush1.msra.mxu0 %v1638
    %1640 = vmatprep.subr.mxu0 0.0
    %v1641 = vand.u32 %v1482, 4294901760
    %v1642 = vsub.f32 %v1482, %v1641
    %v1643 = vand.u32 %v1642, 4294901760
    %v1644 = vsub.f32 %v1642, %v1643
    %v1645 = vand.u32 %v1644, 4294901760
    %1646 = vmatpush1.msra.mxu0 %v1645
    %1647 = vmatprep.subr.mxu0 0.0
    %v1648 = vand.u32 %v1481, 4294901760
    %v1649 = vsub.f32 %v1481, %v1648
    %v1650 = vand.u32 %v1649, 4294901760
    %v1651 = vsub.f32 %v1649, %v1650
    %v1652 = vand.u32 %v1651, 4294901760
    %1653 = vmatpush1.msra.mxu0 %v1652
    %1654 = vmatprep.subr.mxu0 0.0
    %v1655 = vand.u32 %v1480, 4294901760
    %v1656 = vsub.f32 %v1480, %v1655
    %v1657 = vand.u32 %v1656, 4294901760
    %v1658 = vsub.f32 %v1656, %v1657
    %v1659 = vand.u32 %v1658, 4294901760
    %1660 = vmatpush1.msra.mxu0 %v1659
    %1661 = vmatprep.subr.mxu0 0.0
    %v1662 = vand.u32 %v1479, 4294901760
    %v1663 = vsub.f32 %v1479, %v1662
    %v1664 = vand.u32 %v1663, 4294901760
    %v1665 = vsub.f32 %v1663, %v1664
    %v1666 = vand.u32 %v1665, 4294901760
    %1667 = vmatpush1.msra.mxu0 %v1666
    %1668 = vmatprep.subr.mxu0 0.0
    %v1669 = vand.u32 %v1478, 4294901760
    %v1670 = vsub.f32 %v1478, %v1669
    %v1671 = vand.u32 %v1670, 4294901760
    %v1672 = vsub.f32 %v1670, %v1671
    %v1673 = vand.u32 %v1672, 4294901760
    %1674 = vmatpush1.msra.mxu0 %v1673
    %1675 = vmatprep.subr.mxu0 0.0
    %v1676 = vand.u32 %v1477, 4294901760
    %v1677 = vsub.f32 %v1477, %v1676
    %v1678 = vand.u32 %v1677, 4294901760
    %v1679 = vsub.f32 %v1677, %v1678
    %v1680 = vand.u32 %v1679, 4294901760
    %1681 = vmatpush1.msra.mxu0 %v1680
    %1682 = vmatprep.subr.mxu0 0.0
    %v1683 = vand.u32 %v1476, 4294901760
    %v1684 = vsub.f32 %v1476, %v1683
    %v1685 = vand.u32 %v1684, 4294901760
    %v1686 = vsub.f32 %v1684, %v1685
    %v1687 = vand.u32 %v1686, 4294901760
    %1688 = vmatpush1.msra.mxu0 %v1687
    %1689 = vmatprep.subr.mxu0 0.0
    %v1690 = vand.u32 %v1475, 4294901760
    %v1691 = vsub.f32 %v1475, %v1690
    %v1692 = vand.u32 %v1691, 4294901760
    %v1693 = vsub.f32 %v1691, %v1692
    %v1694 = vand.u32 %v1693, 4294901760
    %1695 = vmatpush1.msra.mxu0 %v1694
    %1696 = vmatprep.subr.mxu0 0.0
    %v1697 = vand.u32 %v1474, 4294901760
    %v1698 = vsub.f32 %v1474, %v1697
    %v1699 = vand.u32 %v1698, 4294901760
    %v1700 = vsub.f32 %v1698, %v1699
    %v1701 = vand.u32 %v1700, 4294901760
    %1702 = vmatpush1.msra.mxu0 %v1701
    %1703 = vmatprep.subr.mxu0 0.0
    %1704 = vmatpush2.msra.mxu0 0.0
    %1705 = vmatprep.subr.mxu0 0.0
    %1706 = vmatpush2.msra.mxu0 0.0
    %1707 = vmatprep.subr.mxu0 0.0
    %1708 = vmatpush2.msra.mxu0 0.0
    %1709 = vmatprep.subr.mxu0 0.0
    %1710 = vmatpush2.msra.mxu0 0.0
    %1711 = vmatprep.subr.mxu0 0.0
    %1712 = vmatpush2.msra.mxu0 0.0
    %1713 = vmatprep.subr.mxu0 0.0
    %1714 = vmatpush2.msra.mxu0 0.0
    %1715 = vmatprep.subr.mxu0 0.0
    %1716 = vmatpush2.msra.mxu0 0.0
    %1717 = vmatprep.subr.mxu0 0.0
    %1718 = vmatpush2.msra.mxu0 0.0
    %1719 = vmatprep.subr.mxu0 0.0
    %1720 = vmatpush2.msra.mxu0 0.0
    %1721 = vmatprep.subr.mxu0 0.0
    %1722 = vmatpush2.msra.mxu0 0.0
    %1723 = vmatprep.subr.mxu0 0.0
    %1724 = vmatpush2.msra.mxu0 0.0
    %1725 = vmatprep.subr.mxu0 0.0
    %1726 = vmatpush2.msra.mxu0 0.0
    %1727 = vmatprep.subr.mxu0 0.0
    %1728 = vmatpush2.msra.mxu0 0.0
    %1729 = vmatprep.subr.mxu0 0.0
    %1730 = vmatpush2.msra.mxu0 0.0
    %1731 = vmatprep.subr.mxu0 0.0
    %1732 = vmatpush2.msra.mxu0 0.0
    %1733 = vmatprep.subr.mxu0 0.0
    %1734 = vmatpush2.msra.mxu0 0.0
    %1735 = vmatprep.mubr.f32.mxu0 0.0
    %v1736 = vand.u32 %v1472, 4294901760
    %1737 = vmatmul.mubr.f32.gmra.mxu0 %v1736
    %v1738 = vpop.f32.mrf.mxu0
    %v1739 = vadd.f32 %v1578, %v1738
    %v1740 = vpop.f32.mrf.mxu0
    %1741 = vmatprep.mubr.f32.mxu0 0.0
    %v1742 = vand.u32 %v1473, 4294901760
    %1743 = vmatmul.mubr.f32.gmra.mxu0 %v1742
    %v1744 = vpop.f32.mrf.mxu0
    %v1745 = vadd.f32 %v1588, %v1744
    %v1746 = vpop.f32.mrf.mxu0
    %1747 = vdwg.mxu0
    %1748 = vmatprep.subr.mxu0 0.0
    %v1749 = vand.u32 %v1489, 4294901760
    %v1750 = vsub.f32 %v1489, %v1749
    %1751 = vmatpush1.msra.mxu0 %v1750
    %1752 = vmatprep.subr.mxu0 0.0
    %v1753 = vand.u32 %v1488, 4294901760
    %v1754 = vsub.f32 %v1488, %v1753
    %1755 = vmatpush1.msra.mxu0 %v1754
    %1756 = vmatprep.subr.mxu0 0.0
    %v1757 = vand.u32 %v1487, 4294901760
    %v1758 = vsub.f32 %v1487, %v1757
    %1759 = vmatpush1.msra.mxu0 %v1758
    %1760 = vmatprep.subr.mxu0 0.0
    %v1761 = vand.u32 %v1486, 4294901760
    %v1762 = vsub.f32 %v1486, %v1761
    %1763 = vmatpush1.msra.mxu0 %v1762
    %1764 = vmatprep.subr.mxu0 0.0
    %v1765 = vand.u32 %v1485, 4294901760
    %v1766 = vsub.f32 %v1485, %v1765
    %1767 = vmatpush1.msra.mxu0 %v1766
    %1768 = vmatprep.subr.mxu0 0.0
    %v1769 = vand.u32 %v1484, 4294901760
    %v1770 = vsub.f32 %v1484, %v1769
    %1771 = vmatpush1.msra.mxu0 %v1770
    %1772 = vmatprep.subr.mxu0 0.0
    %v1773 = vand.u32 %v1483, 4294901760
    %v1774 = vsub.f32 %v1483, %v1773
    %1775 = vmatpush1.msra.mxu0 %v1774
    %1776 = vmatprep.subr.mxu0 0.0
    %v1777 = vand.u32 %v1482, 4294901760
    %v1778 = vsub.f32 %v1482, %v1777
    %1779 = vmatpush1.msra.mxu0 %v1778
    %1780 = vmatprep.subr.mxu0 0.0
    %v1781 = vand.u32 %v1481, 4294901760
    %v1782 = vsub.f32 %v1481, %v1781
    %1783 = vmatpush1.msra.mxu0 %v1782
    %1784 = vmatprep.subr.mxu0 0.0
    %v1785 = vand.u32 %v1480, 4294901760
    %v1786 = vsub.f32 %v1480, %v1785
    %1787 = vmatpush1.msra.mxu0 %v1786
    %1788 = vmatprep.subr.mxu0 0.0
    %v1789 = vand.u32 %v1479, 4294901760
    %v1790 = vsub.f32 %v1479, %v1789
    %1791 = vmatpush1.msra.mxu0 %v1790
    %1792 = vmatprep.subr.mxu0 0.0
    %v1793 = vand.u32 %v1478, 4294901760
    %v1794 = vsub.f32 %v1478, %v1793
    %1795 = vmatpush1.msra.mxu0 %v1794
    %1796 = vmatprep.subr.mxu0 0.0
    %v1797 = vand.u32 %v1477, 4294901760
    %v1798 = vsub.f32 %v1477, %v1797
    %1799 = vmatpush1.msra.mxu0 %v1798
    %1800 = vmatprep.subr.mxu0 0.0
    %v1801 = vand.u32 %v1476, 4294901760
    %v1802 = vsub.f32 %v1476, %v1801
    %1803 = vmatpush1.msra.mxu0 %v1802
    %1804 = vmatprep.subr.mxu0 0.0
    %v1805 = vand.u32 %v1475, 4294901760
    %v1806 = vsub.f32 %v1475, %v1805
    %1807 = vmatpush1.msra.mxu0 %v1806
    %1808 = vmatprep.subr.mxu0 0.0
    %v1809 = vand.u32 %v1474, 4294901760
    %v1810 = vsub.f32 %v1474, %v1809
    %1811 = vmatpush1.msra.mxu0 %v1810
    %1812 = vmatprep.subr.mxu0 0.0
    %1813 = vmatpush2.msra.mxu0 0.0
    %1814 = vmatprep.subr.mxu0 0.0
    %1815 = vmatpush2.msra.mxu0 0.0
    %1816 = vmatprep.subr.mxu0 0.0
    %1817 = vmatpush2.msra.mxu0 0.0
    %1818 = vmatprep.subr.mxu0 0.0
    %1819 = vmatpush2.msra.mxu0 0.0
    %1820 = vmatprep.subr.mxu0 0.0
    %1821 = vmatpush2.msra.mxu0 0.0
    %1822 = vmatprep.subr.mxu0 0.0
    %1823 = vmatpush2.msra.mxu0 0.0
    %1824 = vmatprep.subr.mxu0 0.0
    %1825 = vmatpush2.msra.mxu0 0.0
    %1826 = vmatprep.subr.mxu0 0.0
    %1827 = vmatpush2.msra.mxu0 0.0
    %1828 = vmatprep.subr.mxu0 0.0
    %1829 = vmatpush2.msra.mxu0 0.0
    %1830 = vmatprep.subr.mxu0 0.0
    %1831 = vmatpush2.msra.mxu0 0.0
    %1832 = vmatprep.subr.mxu0 0.0
    %1833 = vmatpush2.msra.mxu0 0.0
    %1834 = vmatprep.subr.mxu0 0.0
    %1835 = vmatpush2.msra.mxu0 0.0
    %1836 = vmatprep.subr.mxu0 0.0
    %1837 = vmatpush2.msra.mxu0 0.0
    %1838 = vmatprep.subr.mxu0 0.0
    %1839 = vmatpush2.msra.mxu0 0.0
    %1840 = vmatprep.subr.mxu0 0.0
    %1841 = vmatpush2.msra.mxu0 0.0
    %1842 = vmatprep.subr.mxu0 0.0
    %1843 = vmatpush2.msra.mxu0 0.0
    %1844 = vmatprep.mubr.f32.mxu0 0.0
    %v1845 = vand.u32 %v1472, 4294901760
    %v1846 = vsub.f32 %v1472, %v1845
    %1847 = vmatmul.mubr.f32.gmra.mxu0 %v1846
    %v1848 = vpop.f32.mrf.mxu0
    %v1849 = vadd.f32 %v1739, %v1848
    %v1850 = vpop.f32.mrf.mxu0
    %1851 = vmatprep.mubr.f32.mxu0 0.0
    %v1852 = vand.u32 %v1473, 4294901760
    %v1853 = vsub.f32 %v1473, %v1852
    %1854 = vmatmul.mubr.f32.gmra.mxu0 %v1853
    %v1855 = vpop.f32.mrf.mxu0
    %v1856 = vadd.f32 %v1745, %v1855
    %v1857 = vpop.f32.mrf.mxu0
    %1858 = vdwg.mxu0
    %1859 = vmatprep.subr.mxu0 0.0
    %v1860 = vand.u32 %v1489, 4294901760
    %1861 = vmatpush1.msra.mxu0 %v1860
    %1862 = vmatprep.subr.mxu0 0.0
    %v1863 = vand.u32 %v1488, 4294901760
    %1864 = vmatpush1.msra.mxu0 %v1863
    %1865 = vmatprep.subr.mxu0 0.0
    %v1866 = vand.u32 %v1487, 4294901760
    %1867 = vmatpush1.msra.mxu0 %v1866
    %1868 = vmatprep.subr.mxu0 0.0
    %v1869 = vand.u32 %v1486, 4294901760
    %1870 = vmatpush1.msra.mxu0 %v1869
    %1871 = vmatprep.subr.mxu0 0.0
    %v1872 = vand.u32 %v1485, 4294901760
    %1873 = vmatpush1.msra.mxu0 %v1872
    %1874 = vmatprep.subr.mxu0 0.0
    %v1875 = vand.u32 %v1484, 4294901760
    %1876 = vmatpush1.msra.mxu0 %v1875
    %1877 = vmatprep.subr.mxu0 0.0
    %v1878 = vand.u32 %v1483, 4294901760
    %1879 = vmatpush1.msra.mxu0 %v1878
    %1880 = vmatprep.subr.mxu0 0.0
    %v1881 = vand.u32 %v1482, 4294901760
    %1882 = vmatpush1.msra.mxu0 %v1881
    %1883 = vmatprep.subr.mxu0 0.0
    %v1884 = vand.u32 %v1481, 4294901760
    %1885 = vmatpush1.msra.mxu0 %v1884
    %1886 = vmatprep.subr.mxu0 0.0
    %v1887 = vand.u32 %v1480, 4294901760
    %1888 = vmatpush1.msra.mxu0 %v1887
    %1889 = vmatprep.subr.mxu0 0.0
    %v1890 = vand.u32 %v1479, 4294901760
    %1891 = vmatpush1.msra.mxu0 %v1890
    %1892 = vmatprep.subr.mxu0 0.0
    %v1893 = vand.u32 %v1478, 4294901760
    %1894 = vmatpush1.msra.mxu0 %v1893
    %1895 = vmatprep.subr.mxu0 0.0
    %v1896 = vand.u32 %v1477, 4294901760
    %1897 = vmatpush1.msra.mxu0 %v1896
    %1898 = vmatprep.subr.mxu0 0.0
    %v1899 = vand.u32 %v1476, 4294901760
    %1900 = vmatpush1.msra.mxu0 %v1899
    %1901 = vmatprep.subr.mxu0 0.0
    %v1902 = vand.u32 %v1475, 4294901760
    %1903 = vmatpush1.msra.mxu0 %v1902
    %1904 = vmatprep.subr.mxu0 0.0
    %v1905 = vand.u32 %v1474, 4294901760
    %1906 = vmatpush1.msra.mxu0 %v1905
    %1907 = vmatprep.subr.mxu0 0.0
    %1908 = vmatpush2.msra.mxu0 0.0
    %1909 = vmatprep.subr.mxu0 0.0
    %1910 = vmatpush2.msra.mxu0 0.0
    %1911 = vmatprep.subr.mxu0 0.0
    %1912 = vmatpush2.msra.mxu0 0.0
    %1913 = vmatprep.subr.mxu0 0.0
    %1914 = vmatpush2.msra.mxu0 0.0
    %1915 = vmatprep.subr.mxu0 0.0
    %1916 = vmatpush2.msra.mxu0 0.0
    %1917 = vmatprep.subr.mxu0 0.0
    %1918 = vmatpush2.msra.mxu0 0.0
    %1919 = vmatprep.subr.mxu0 0.0
    %1920 = vmatpush2.msra.mxu0 0.0
    %1921 = vmatprep.subr.mxu0 0.0
    %1922 = vmatpush2.msra.mxu0 0.0
    %1923 = vmatprep.subr.mxu0 0.0
    %1924 = vmatpush2.msra.mxu0 0.0
    %1925 = vmatprep.subr.mxu0 0.0
    %1926 = vmatpush2.msra.mxu0 0.0
    %1927 = vmatprep.subr.mxu0 0.0
    %1928 = vmatpush2.msra.mxu0 0.0
    %1929 = vmatprep.subr.mxu0 0.0
    %1930 = vmatpush2.msra.mxu0 0.0
    %1931 = vmatprep.subr.mxu0 0.0
    %1932 = vmatpush2.msra.mxu0 0.0
    %1933 = vmatprep.subr.mxu0 0.0
    %1934 = vmatpush2.msra.mxu0 0.0
    %1935 = vmatprep.subr.mxu0 0.0
    %1936 = vmatpush2.msra.mxu0 0.0
    %1937 = vmatprep.subr.mxu0 0.0
    %1938 = vmatpush2.msra.mxu0 0.0
    %1939 = vmatprep.mubr.f32.mxu0 0.0
    %v1940 = vand.u32 %v1472, 4294901760
    %v1941 = vsub.f32 %v1472, %v1940
    %v1942 = vand.u32 %v1941, 4294901760
    %1943 = vmatmul.mubr.f32.gmra.mxu0 %v1942
    %v1944 = vpop.f32.mrf.mxu0
    %v1945 = vadd.f32 %v1849, %v1944
    %v1946 = vpop.f32.mrf.mxu0
    %1947 = vmatprep.mubr.f32.mxu0 0.0
    %v1948 = vand.u32 %v1473, 4294901760
    %v1949 = vsub.f32 %v1473, %v1948
    %v1950 = vand.u32 %v1949, 4294901760
    %1951 = vmatmul.mubr.f32.gmra.mxu0 %v1950
    %v1952 = vpop.f32.mrf.mxu0
    %v1953 = vadd.f32 %v1856, %v1952
    %v1954 = vpop.f32.mrf.mxu0
    %1955 = vdwg.mxu0
    %1956 = vmatprep.subr.mxu0 0.0
    %v1957 = vand.u32 %v1489, 4294901760
    %v1958 = vsub.f32 %v1489, %v1957
    %v1959 = vand.u32 %v1958, 4294901760
    %1960 = vmatpush1.msra.mxu0 %v1959
    %1961 = vmatprep.subr.mxu0 0.0
    %v1962 = vand.u32 %v1488, 4294901760
    %v1963 = vsub.f32 %v1488, %v1962
    %v1964 = vand.u32 %v1963, 4294901760
    %1965 = vmatpush1.msra.mxu0 %v1964
    %1966 = vmatprep.subr.mxu0 0.0
    %v1967 = vand.u32 %v1487, 4294901760
    %v1968 = vsub.f32 %v1487, %v1967
    %v1969 = vand.u32 %v1968, 4294901760
    %1970 = vmatpush1.msra.mxu0 %v1969
    %1971 = vmatprep.subr.mxu0 0.0
    %v1972 = vand.u32 %v1486, 4294901760
    %v1973 = vsub.f32 %v1486, %v1972
    %v1974 = vand.u32 %v1973, 4294901760
    %1975 = vmatpush1.msra.mxu0 %v1974
    %1976 = vmatprep.subr.mxu0 0.0
    %v1977 = vand.u32 %v1485, 4294901760
    %v1978 = vsub.f32 %v1485, %v1977
    %v1979 = vand.u32 %v1978, 4294901760
    %1980 = vmatpush1.msra.mxu0 %v1979
    %1981 = vmatprep.subr.mxu0 0.0
    %v1982 = vand.u32 %v1484, 4294901760
    %v1983 = vsub.f32 %v1484, %v1982
    %v1984 = vand.u32 %v1983, 4294901760
    %1985 = vmatpush1.msra.mxu0 %v1984
    %1986 = vmatprep.subr.mxu0 0.0
    %v1987 = vand.u32 %v1483, 4294901760
    %v1988 = vsub.f32 %v1483, %v1987
    %v1989 = vand.u32 %v1988, 4294901760
    %1990 = vmatpush1.msra.mxu0 %v1989
    %1991 = vmatprep.subr.mxu0 0.0
    %v1992 = vand.u32 %v1482, 4294901760
    %v1993 = vsub.f32 %v1482, %v1992
    %v1994 = vand.u32 %v1993, 4294901760
    %1995 = vmatpush1.msra.mxu0 %v1994
    %1996 = vmatprep.subr.mxu0 0.0
    %v1997 = vand.u32 %v1481, 4294901760
    %v1998 = vsub.f32 %v1481, %v1997
    %v1999 = vand.u32 %v1998, 4294901760
    %2000 = vmatpush1.msra.mxu0 %v1999
    %2001 = vmatprep.subr.mxu0 0.0
    %v2002 = vand.u32 %v1480, 4294901760
    %v2003 = vsub.f32 %v1480, %v2002
    %v2004 = vand.u32 %v2003, 4294901760
    %2005 = vmatpush1.msra.mxu0 %v2004
    %2006 = vmatprep.subr.mxu0 0.0
    %v2007 = vand.u32 %v1479, 4294901760
    %v2008 = vsub.f32 %v1479, %v2007
    %v2009 = vand.u32 %v2008, 4294901760
    %2010 = vmatpush1.msra.mxu0 %v2009
    %2011 = vmatprep.subr.mxu0 0.0
    %v2012 = vand.u32 %v1478, 4294901760
    %v2013 = vsub.f32 %v1478, %v2012
    %v2014 = vand.u32 %v2013, 4294901760
    %2015 = vmatpush1.msra.mxu0 %v2014
    %2016 = vmatprep.subr.mxu0 0.0
    %v2017 = vand.u32 %v1477, 4294901760
    %v2018 = vsub.f32 %v1477, %v2017
    %v2019 = vand.u32 %v2018, 4294901760
    %2020 = vmatpush1.msra.mxu0 %v2019
    %2021 = vmatprep.subr.mxu0 0.0
    %v2022 = vand.u32 %v1476, 4294901760
    %v2023 = vsub.f32 %v1476, %v2022
    %v2024 = vand.u32 %v2023, 4294901760
    %2025 = vmatpush1.msra.mxu0 %v2024
    %2026 = vmatprep.subr.mxu0 0.0
    %v2027 = vand.u32 %v1475, 4294901760
    %v2028 = vsub.f32 %v1475, %v2027
    %v2029 = vand.u32 %v2028, 4294901760
    %2030 = vmatpush1.msra.mxu0 %v2029
    %2031 = vmatprep.subr.mxu0 0.0
    %v2032 = vand.u32 %v1474, 4294901760
    %v2033 = vsub.f32 %v1474, %v2032
    %v2034 = vand.u32 %v2033, 4294901760
    %2035 = vmatpush1.msra.mxu0 %v2034
    %2036 = vmatprep.subr.mxu0 0.0
    %2037 = vmatpush2.msra.mxu0 0.0
    %2038 = vmatprep.subr.mxu0 0.0
    %2039 = vmatpush2.msra.mxu0 0.0
    %2040 = vmatprep.subr.mxu0 0.0
    %2041 = vmatpush2.msra.mxu0 0.0
    %2042 = vmatprep.subr.mxu0 0.0
    %2043 = vmatpush2.msra.mxu0 0.0
    %2044 = vmatprep.subr.mxu0 0.0
    %2045 = vmatpush2.msra.mxu0 0.0
    %2046 = vmatprep.subr.mxu0 0.0
    %2047 = vmatpush2.msra.mxu0 0.0
    %2048 = vmatprep.subr.mxu0 0.0
    %2049 = vmatpush2.msra.mxu0 0.0
    %2050 = vmatprep.subr.mxu0 0.0
    %2051 = vmatpush2.msra.mxu0 0.0
    %2052 = vmatprep.subr.mxu0 0.0
    %2053 = vmatpush2.msra.mxu0 0.0
    %2054 = vmatprep.subr.mxu0 0.0
    %2055 = vmatpush2.msra.mxu0 0.0
    %2056 = vmatprep.subr.mxu0 0.0
    %2057 = vmatpush2.msra.mxu0 0.0
    %2058 = vmatprep.subr.mxu0 0.0
    %2059 = vmatpush2.msra.mxu0 0.0
    %2060 = vmatprep.subr.mxu0 0.0
    %2061 = vmatpush2.msra.mxu0 0.0
    %2062 = vmatprep.subr.mxu0 0.0
    %2063 = vmatpush2.msra.mxu0 0.0
    %2064 = vmatprep.subr.mxu0 0.0
    %2065 = vmatpush2.msra.mxu0 0.0
    %2066 = vmatprep.subr.mxu0 0.0
    %2067 = vmatpush2.msra.mxu0 0.0
    %2068 = vmatprep.mubr.f32.mxu0 0.0
    %v2069 = vand.u32 %v1472, 4294901760
    %2070 = vmatmul.mubr.f32.gmra.mxu0 %v2069
    %v2071 = vpop.f32.mrf.mxu0
    %v2072 = vadd.f32 %v1945, %v2071
    %v2073 = vpop.f32.mrf.mxu0
    %2074 = vmatprep.mubr.f32.mxu0 0.0
    %v2075 = vand.u32 %v1473, 4294901760
    %2076 = vmatmul.mubr.f32.gmra.mxu0 %v2075
    %v2077 = vpop.f32.mrf.mxu0
    %v2078 = vadd.f32 %v1953, %v2077
    %v2079 = vpop.f32.mrf.mxu0
    %2080 = vdwg.mxu0
    %2081 = vmatprep.subr.mxu0 0.0
    %v2082 = vand.u32 %v1489, 4294901760
    %2083 = vmatpush1.msra.mxu0 %v2082
    %2084 = vmatprep.subr.mxu0 0.0
    %v2085 = vand.u32 %v1488, 4294901760
    %2086 = vmatpush1.msra.mxu0 %v2085
    %2087 = vmatprep.subr.mxu0 0.0
    %v2088 = vand.u32 %v1487, 4294901760
    %2089 = vmatpush1.msra.mxu0 %v2088
    %2090 = vmatprep.subr.mxu0 0.0
    %v2091 = vand.u32 %v1486, 4294901760
    %2092 = vmatpush1.msra.mxu0 %v2091
    %2093 = vmatprep.subr.mxu0 0.0
    %v2094 = vand.u32 %v1485, 4294901760
    %2095 = vmatpush1.msra.mxu0 %v2094
    %2096 = vmatprep.subr.mxu0 0.0
    %v2097 = vand.u32 %v1484, 4294901760
    %2098 = vmatpush1.msra.mxu0 %v2097
    %2099 = vmatprep.subr.mxu0 0.0
    %v2100 = vand.u32 %v1483, 4294901760
    %2101 = vmatpush1.msra.mxu0 %v2100
    %2102 = vmatprep.subr.mxu0 0.0
    %v2103 = vand.u32 %v1482, 4294901760
    %2104 = vmatpush1.msra.mxu0 %v2103
    %2105 = vmatprep.subr.mxu0 0.0
    %v2106 = vand.u32 %v1481, 4294901760
    %2107 = vmatpush1.msra.mxu0 %v2106
    %2108 = vmatprep.subr.mxu0 0.0
    %v2109 = vand.u32 %v1480, 4294901760
    %2110 = vmatpush1.msra.mxu0 %v2109
    %2111 = vmatprep.subr.mxu0 0.0
    %v2112 = vand.u32 %v1479, 4294901760
    %2113 = vmatpush1.msra.mxu0 %v2112
    %2114 = vmatprep.subr.mxu0 0.0
    %v2115 = vand.u32 %v1478, 4294901760
    %2116 = vmatpush1.msra.mxu0 %v2115
    %2117 = vmatprep.subr.mxu0 0.0
    %v2118 = vand.u32 %v1477, 4294901760
    %2119 = vmatpush1.msra.mxu0 %v2118
    %2120 = vmatprep.subr.mxu0 0.0
    %v2121 = vand.u32 %v1476, 4294901760
    %2122 = vmatpush1.msra.mxu0 %v2121
    %2123 = vmatprep.subr.mxu0 0.0
    %v2124 = vand.u32 %v1475, 4294901760
    %2125 = vmatpush1.msra.mxu0 %v2124
    %2126 = vmatprep.subr.mxu0 0.0
    %v2127 = vand.u32 %v1474, 4294901760
    %2128 = vmatpush1.msra.mxu0 %v2127
    %2129 = vmatprep.subr.mxu0 0.0
    %2130 = vmatpush2.msra.mxu0 0.0
    %2131 = vmatprep.subr.mxu0 0.0
    %2132 = vmatpush2.msra.mxu0 0.0
    %2133 = vmatprep.subr.mxu0 0.0
    %2134 = vmatpush2.msra.mxu0 0.0
    %2135 = vmatprep.subr.mxu0 0.0
    %2136 = vmatpush2.msra.mxu0 0.0
    %2137 = vmatprep.subr.mxu0 0.0
    %2138 = vmatpush2.msra.mxu0 0.0
    %2139 = vmatprep.subr.mxu0 0.0
    %2140 = vmatpush2.msra.mxu0 0.0
    %2141 = vmatprep.subr.mxu0 0.0
    %2142 = vmatpush2.msra.mxu0 0.0
    %2143 = vmatprep.subr.mxu0 0.0
    %2144 = vmatpush2.msra.mxu0 0.0
    %2145 = vmatprep.subr.mxu0 0.0
    %2146 = vmatpush2.msra.mxu0 0.0
    %2147 = vmatprep.subr.mxu0 0.0
    %2148 = vmatpush2.msra.mxu0 0.0
    %2149 = vmatprep.subr.mxu0 0.0
    %2150 = vmatpush2.msra.mxu0 0.0
    %2151 = vmatprep.subr.mxu0 0.0
    %2152 = vmatpush2.msra.mxu0 0.0
    %2153 = vmatprep.subr.mxu0 0.0
    %2154 = vmatpush2.msra.mxu0 0.0
    %2155 = vmatprep.subr.mxu0 0.0
    %2156 = vmatpush2.msra.mxu0 0.0
    %2157 = vmatprep.subr.mxu0 0.0
    %2158 = vmatpush2.msra.mxu0 0.0
    %2159 = vmatprep.subr.mxu0 0.0
    %2160 = vmatpush2.msra.mxu0 0.0
    %2161 = vmatprep.mubr.f32.mxu0 0.0
    %v2162 = vand.u32 %v1472, 4294901760
    %2163 = vmatmul.mubr.f32.gmra.mxu0 %v2162
    %v2164 = vpop.f32.mrf.mxu0
    %v2165 = vadd.f32 %v2072, %v2164
    %v2166 = vpop.f32.mrf.mxu0
    %2167 = vmatprep.mubr.f32.mxu0 0.0
    %v2168 = vand.u32 %v1473, 4294901760
    %2169 = vmatmul.mubr.f32.gmra.mxu0 %v2168
    %v2170 = vpop.f32.mrf.mxu0
    %v2171 = vadd.f32 %v2078, %v2170
    %v2172 = vpop.f32.mrf.mxu0
    %2173 = vdwg.mxu0
    %2176 = vrot.lane.b32.xlu0 %v2165, 96
    %v2177 = vpop.permute.xlu0 %2176
    %2178 = vrot.lane.b32.xlu0 %v2171, 96
    %v2179 = vpop.permute.xlu0 %2178
    %vm2182 = vcmask 1048320
    %2183 = vst.msk [vmem:[#allocation2] sm:$0xff] %vm2182, %v2177
    %2184 = vst.msk [vmem:[#allocation2 + $0x8] sm:$0xff] %vm2182, %v2179
    // Predicated region
    $region18: #{tpu_custom_call.1} parent=1 // pred_check
      _
    $region19: #{tpu_custom_call.1} parent=1 // pred_check_branch
      %2186 = sbr.rel (0) target = $region21
    $region20: #{tpu_custom_call.1} parent=1 // pred_region
      %s2188 = ssub.s32 256, 256
      %2189 = vsyncadd [#allocation3], %s2188
      %s2190 = sshll.u32 [#allocation2], 4
      %s2191 = int_to_ptr.vmem [resolvable:$true] %s2190
      %2196 = dma.vmem_to_hbm [thread:$0]  %s2191, 256, %s4, [#allocation3], 128, 128, 8
    $region21: #{tpu_custom_call.1} parent=1 // pred_fallthru
      _
    // Predicated region
    $region22: #{tpu_custom_call.1} parent=1 // pred_check
      _
    $region23: #{tpu_custom_call.1} parent=1 // pred_check_branch
      %2198 = sbr.rel (0) target = $region25
    $region24: #{tpu_custom_call.1} parent=1 // pred_region
      %2199 = dma.done [#allocation3], 256
    $region25: #{tpu_custom_call.1} parent=1 // pred_fallthru
      _
    %2200 = vsyncpa [#allocation3], 1

</llo_original>
